<compile_context>
chip_gen: v7x
topology: tpu7x:2x2x1
jax: 0.10.0
libtpu: 0.0.40
codegen_flags: <defaults>
</compile_context>

<pallas_src>
import functools

import jax
import jax.numpy as jnp
from jax.experimental import pallas as pl
from jax.experimental.pallas import tpu as pltpu


def _round_up(x, m):
    return (x + m - 1) // m * m


def _choose_tile(batch):
    """Batch tile: full batch when tiny, else >=2 tiles of up to 1024 rows."""
    if batch <= 256:
        return batch                      # single tile == full array extent
    # At least two tiles so the "parallel" batch axis can shard across the
    # two TensorCores on v7x; tiles are multiples of 256 sublanes, <= 1024.
    return min(1024, _round_up(-(-batch // 2), 256))


# -----------------------------------------------------------------------------
# Pallas kernel: pooler(tanh) -> FC1 -> ReLU -> FC2 -> sigmoid + per-row BCE
# -----------------------------------------------------------------------------
def siamese_head_kernel(x_ref, pw_ref, pb_ref, w1_ref, b1_ref, w2_ref, b2_ref,
                        y_ref, p_ref, bce_ref):
    # Pooler projection: tanh(x @ pool_w + pool_b).  The only MXU-sized GEMM
    # (K = N = 768); bf16 inputs, f32 accumulation, tanh in bf16 (result is
    # consumed in bf16 by FC1 anyway).
    acc = jnp.dot(x_ref[...], pw_ref[...],
                  preferred_element_type=jnp.float32)            # [TB, 768] f32
    pooled = jnp.tanh((acc + pb_ref[...]).astype(jnp.bfloat16))  # [TB, 768] bf16

    # FC1 (+ ReLU).  Hidden width is zero-padded to a full 128-lane tile.
    h = jnp.maximum(
        jnp.dot(pooled, w1_ref[...],
                preferred_element_type=jnp.float32) + b1_ref[...],
        0.0)                                                     # [TB, Hp] f32

    # FC2 (out_features = 1): VPU multiply + XLU lane reduction instead of an
    # N=1 MXU matmul.  Padded hidden columns have zero weight -> no effect.
    logits = (jnp.sum(h * w2_ref[...], axis=-1, keepdims=True)
              + b2_ref[0, 0])                                    # [TB, 1]

    # Sigmoid -> probabilities, written as a [TB, 1] column.
    p_ref[...] = 1.0 / (1.0 + jnp.exp(-logits))

    # Binary cross entropy directly from logits (softplus form, exact):
    #   bce = max(z, 0) - y*z + log(1 + exp(-|z|))
    # Ragged last-tile rows read garbage labels but their output rows are
    # out of bounds and therefore never written back.
    y = y_ref[...]                                               # [TB, 1]
    bce_ref[...] = (jnp.maximum(logits, 0.0) - y * logits
                    + jnp.log(1.0 + jnp.exp(-jnp.abs(logits))))


def siamese_head(x, pool_w, pool_b, w1, b1, w2, b2, labels):
    """x: [B, 768] pre-pooler features; labels: [B]. Returns (probs[B], loss)."""
    B, D = x.shape
    H = w1.shape[1]
    Hp = _round_up(H, 128)                # hidden padded to full lane width

    TB = _choose_tile(B)
    nb = -(-B // TB)                      # cdiv; last tile may be ragged

    # Kernel consumes x in bf16 (halves the dominant HBM read).  No padded
    # copies of x / labels are materialized.
    xb = x.astype(jnp.bfloat16)                                   # [B, D]
    yb = labels.astype(jnp.float32).reshape(B, 1)                 # [B, 1]

    # Weight packing (small, once per call; pre-pack outside jit in training).
    pw = pool_w.astype(jnp.bfloat16)                              # [D, D]
    pb = pool_b.reshape(1, D).astype(jnp.float32)                 # [1, D]
    w1p = jnp.zeros((D, Hp), jnp.bfloat16).at[:, :H].set(
        w1.astype(jnp.bfloat16))                                  # [D, Hp]
    b1p = jnp.zeros((1, Hp), jnp.float32).at[:, :H].set(
        b1.reshape(1, H).astype(jnp.float32))                     # [1, Hp]
    w2p = jnp.zeros((1, Hp), jnp.float32).at[:, :H].set(
        w2.reshape(1, H).astype(jnp.float32))                     # [1, Hp]
    b2s = b2.reshape(1, 1).astype(jnp.float32)                    # SMEM scalar

    probs_col, bce_col = pl.pallas_call(
        siamese_head_kernel,
        out_shape=(
            jax.ShapeDtypeStruct((B, 1), jnp.float32),   # per-row probability
            jax.ShapeDtypeStruct((B, 1), jnp.float32),   # per-row BCE
        ),
        grid=(nb,),
        in_specs=[
            pl.BlockSpec((TB, D), lambda i: (i, 0)),        # x tile (bf16)
            pl.BlockSpec((D, D), lambda i: (0, 0)),         # pool_w (resident)
            pl.BlockSpec((1, D), lambda i: (0, 0)),         # pool_b
            pl.BlockSpec((D, Hp), lambda i: (0, 0)),        # W1 (resident)
            pl.BlockSpec((1, Hp), lambda i: (0, 0)),        # b1
            pl.BlockSpec((1, Hp), lambda i: (0, 0)),        # W2 row (VPU reduce)
            pl.BlockSpec(memory_space=pltpu.MemorySpace.SMEM),  # b2 scalar
            pl.BlockSpec((TB, 1), lambda i: (i, 0)),        # labels
        ],
        out_specs=(
            pl.BlockSpec((TB, 1), lambda i: (i, 0)),
            pl.BlockSpec((TB, 1), lambda i: (i, 0)),
        ),
        compiler_params=pltpu.CompilerParams(
            dimension_semantics=("parallel",)),
    )(xb, pw, pb, w1p, b1p, w2p, b2s, yb)

    probs = probs_col[:, 0]                       # [B]
    loss = jnp.sum(bce_col[:, 0]) / B             # mean over the true batch
    return probs, loss


# -----------------------------------------------------------------------------
# Deterministic stand-in for the pretrained BERT encoder (plain JAX glue).
# Produces the pre-pooler [B, 768] features (in bf16, which is what the fused
# Pallas head consumes); the pooler projection itself is fused into the kernel.
# -----------------------------------------------------------------------------
def standin_bert_features(params, input_ids, token_type_ids, attention_mask):
    tok_emb = params["tok_emb"][input_ids]            # [B, S, 768]
    typ_emb = params["typ_emb"][token_type_ids]       # [B, S, 768]
    emb = jnp.tanh(tok_emb + typ_emb)
    mask = attention_mask.astype(jnp.float32)[..., None]          # [B, S, 1]
    feats = (emb * mask).sum(axis=1) / jnp.maximum(mask.sum(axis=1), 1.0)
    return feats.astype(jnp.bfloat16)                 # [B, 768] bf16


def siamese_forward(params, input_ids, token_type_ids, attention_mask, labels):
    feats = standin_bert_features(params, input_ids, token_type_ids,
                                  attention_mask)
    return siamese_head(feats,
                        params["pool_w"], params["pool_b"],
                        params["fc1_w"], params["fc1_b"],
                        params["fc2_w"], params["fc2_b"],
                        labels)


# -----------------------------------------------------------------------------
# Deterministic parameter construction
# -----------------------------------------------------------------------------
def make_params(key, vocab_size=30, bert_dim=768, hidden_size=32):
    ks = jax.random.split(key, 7)
    scale = 0.02
    return {
        "tok_emb": scale * jax.random.normal(ks[0], (vocab_size, bert_dim), jnp.float32),
        "typ_emb": scale * jax.random.normal(ks[1], (2, bert_dim), jnp.float32),
        "pool_w":  scale * jax.random.normal(ks[2], (bert_dim, bert_dim), jnp.float32),
        "pool_b":  jnp.zeros((bert_dim,), jnp.float32),
        # FC1: Linear(768, hidden_size), stored as [in, out]
        "fc1_w":   scale * jax.random.normal(ks[3], (bert_dim, hidden_size), jnp.float32),
        "fc1_b":   0.01 * jax.random.normal(ks[4], (1, hidden_size), jnp.float32),
        # FC2: Linear(hidden_size, 1)
        "fc2_w":   scale * jax.random.normal(ks[5], (hidden_size, 1), jnp.float32),
        "fc2_b":   0.01 * jax.random.normal(ks[6], (1, 1), jnp.float32),
    }


if __name__ == "__main__":
    key = jax.random.PRNGKey(0)
    k_param, k_ids, k_mask, k_lab = jax.random.split(key, 4)

    B, S = 2, 8
    params = make_params(k_param, vocab_size=30, bert_dim=768, hidden_size=32)

    input_ids = jax.random.randint(k_ids, (B, S), 0, 30, dtype=jnp.int32)
    token_type_ids = jnp.zeros((B, S), jnp.int32)
    attention_mask = (jax.random.uniform(k_mask, (B, S)) > 0.2).astype(jnp.int32)
    labels = jax.random.bernoulli(k_lab, 0.5, (B,)).astype(jnp.float32)

    probs, loss = jax.jit(functools.partial(siamese_forward, params))(
        input_ids, token_type_ids, attention_mask, labels)
    jax.block_until_ready((probs, loss))

    # sanity: probabilities in [0, 1], finite loss
    assert probs.shape == (B,)
    assert bool(jnp.all((probs >= 0.0) & (probs <= 1.0)))
    assert bool(jnp.isfinite(loss))

    print("KERNEL_OK")
</pallas_src>

<mosaic_0001>
module attributes {stable_mosaic.version = 11 : i64} {
  func.func @siamese_head_kernel(%arg0: i32, %arg1: memref<2x768xbf16, #tpu.memory_space<vmem>>, %arg2: memref<768x768xbf16, #tpu.memory_space<vmem>>, %arg3: memref<1x768xf32, #tpu.memory_space<vmem>>, %arg4: memref<768x128xbf16, #tpu.memory_space<vmem>>, %arg5: memref<1x128xf32, #tpu.memory_space<vmem>>, %arg6: memref<1x128xf32, #tpu.memory_space<vmem>>, %arg7: memref<1x1xf32, #tpu.memory_space<smem>>, %arg8: memref<2x1xf32, #tpu.memory_space<vmem>>, %arg9: memref<2x1xf32, #tpu.memory_space<vmem>>, %arg10: memref<2x1xf32, #tpu.memory_space<vmem>>) attributes {dimension_semantics = [#tpu.dimension_semantics<parallel>], iteration_bounds = array<i64: 1>, scalar_prefetch = 0 : i64, scratch_operands = 0 : i64, tpu.core_type = #tpu.core_type<tc>, window_params = [{transform_indices = @transform_0, window_bounds = array<i64: 2, 768>}, {pipeline_mode = #tpu.pipeline_mode<synchronous>, transform_indices = @transform_1, window_bounds = array<i64: 768, 768>}, {pipeline_mode = #tpu.pipeline_mode<synchronous>, transform_indices = @transform_2, window_bounds = array<i64: 1, 768>}, {pipeline_mode = #tpu.pipeline_mode<synchronous>, transform_indices = @transform_3, window_bounds = array<i64: 768, 128>}, {pipeline_mode = #tpu.pipeline_mode<synchronous>, transform_indices = @transform_4, window_bounds = array<i64: 1, 128>}, {pipeline_mode = #tpu.pipeline_mode<synchronous>, transform_indices = @transform_5, window_bounds = array<i64: 1, 128>}, {transform_indices = @transform_6, window_bounds = array<i64: 1, 1>}, {transform_indices = @transform_7, window_bounds = array<i64: 2, 1>}, {transform_indices = @transform_8, window_bounds = array<i64: 2, 1>}, {transform_indices = @transform_9, window_bounds = array<i64: 2, 1>}]} {
    %c0 = arith.constant 0 : index
    %c0_0 = arith.constant 0 : index
    %0 = vector.load %arg1[%c0, %c0_0] : memref<2x768xbf16, #tpu.memory_space<vmem>>, vector<2x768xbf16>
    %c0_1 = arith.constant 0 : index
    %c0_2 = arith.constant 0 : index
    %1 = vector.load %arg2[%c0_1, %c0_2] : memref<768x768xbf16, #tpu.memory_space<vmem>>, vector<768x768xbf16>
    %cst = arith.constant dense<0.000000e+00> : vector<2x768xf32>
    %2 = tpu.matmul %0, %1, %cst {dimension_numbers = #tpu.dot_dimension_numbers<[1], [0], [0], [1], [0, 0, 1, 1], [], []>} : vector<2x768xbf16>, vector<768x768xbf16>, vector<2x768xf32> -> vector<2x768xf32>
    %c0_3 = arith.constant 0 : index
    %c0_4 = arith.constant 0 : index
    %3 = vector.load %arg3[%c0_3, %c0_4] : memref<1x768xf32, #tpu.memory_space<vmem>>, vector<1x768xf32>
    %4 = vector.broadcast %3 : vector<1x768xf32> to vector<2x768xf32>
    %5 = arith.addf %2, %4 : vector<2x768xf32>
    %6 = arith.truncf %5 : vector<2x768xf32> to vector<2x768xbf16>
    %7 = math.tanh %6 : vector<2x768xbf16>
    %c0_5 = arith.constant 0 : index
    %c0_6 = arith.constant 0 : index
    %8 = vector.load %arg4[%c0_5, %c0_6] : memref<768x128xbf16, #tpu.memory_space<vmem>>, vector<768x128xbf16>
    %cst_7 = arith.constant dense<0.000000e+00> : vector<2x128xf32>
    %9 = tpu.matmul %7, %8, %cst_7 {dimension_numbers = #tpu.dot_dimension_numbers<[1], [0], [0], [1], [0, 0, 1, 1], [], []>} : vector<2x768xbf16>, vector<768x128xbf16>, vector<2x128xf32> -> vector<2x128xf32>
    %c0_8 = arith.constant 0 : index
    %c0_9 = arith.constant 0 : index
    %10 = vector.load %arg5[%c0_8, %c0_9] : memref<1x128xf32, #tpu.memory_space<vmem>>, vector<1x128xf32>
    %11 = vector.broadcast %10 : vector<1x128xf32> to vector<2x128xf32>
    %12 = arith.addf %9, %11 : vector<2x128xf32>
    %cst_10 = arith.constant 0.000000e+00 : f32
    %13 = vector.broadcast %cst_10 : f32 to vector<2x128xf32>
    %14 = arith.maximumf %12, %13 : vector<2x128xf32>
    %c0_11 = arith.constant 0 : index
    %c0_12 = arith.constant 0 : index
    %15 = vector.load %arg6[%c0_11, %c0_12] : memref<1x128xf32, #tpu.memory_space<vmem>>, vector<1x128xf32>
    %16 = vector.broadcast %15 : vector<1x128xf32> to vector<2x128xf32>
    %17 = arith.mulf %14, %16 : vector<2x128xf32>
    %cst_13 = arith.constant dense<0.000000e+00> : vector<2xf32>
    %18 = vector.multi_reduction <add>, %17, %cst_13 [1] : vector<2x128xf32> to vector<2xf32>
    %19 = vector.shape_cast %18 : vector<2xf32> to vector<2x1xf32>
    %c0_14 = arith.constant 0 : index
    %c0_15 = arith.constant 0 : index
    %20 = memref.load %arg7[%c0_14, %c0_15] : memref<1x1xf32, #tpu.memory_space<smem>>
    %21 = vector.broadcast %20 : f32 to vector<2x1xf32>
    %22 = arith.addf %19, %21 : vector<2x1xf32>
    %cst_16 = arith.constant 0.000000e+00 : f32
    %23 = vector.broadcast %cst_16 : f32 to vector<2x1xf32>
    %24 = arith.subf %23, %22 : vector<2x1xf32>
    %25 = math.exp %24 : vector<2x1xf32>
    %cst_17 = arith.constant 1.000000e+00 : f32
    %26 = vector.broadcast %cst_17 : f32 to vector<2x1xf32>
    %27 = arith.addf %26, %25 : vector<2x1xf32>
    %cst_18 = arith.constant 1.000000e+00 : f32
    %28 = vector.broadcast %cst_18 : f32 to vector<2x1xf32>
    %29 = arith.divf %28, %27 : vector<2x1xf32>
    %c0_19 = arith.constant 0 : index
    %c0_20 = arith.constant 0 : index
    %30 = vector.load %arg9[%c0_19, %c0_20] : memref<2x1xf32, #tpu.memory_space<vmem>>, vector<2x1xf32>
    tpu.vector_store %arg9[%c0_19, %c0_20], %29 {strides = array<i32>} : memref<2x1xf32, #tpu.memory_space<vmem>>, vector<2x1xf32>,
    %c0_21 = arith.constant 0 : index
    %c0_22 = arith.constant 0 : index
    %31 = vector.load %arg8[%c0_21, %c0_22] : memref<2x1xf32, #tpu.memory_space<vmem>>, vector<2x1xf32>
    %cst_23 = arith.constant 0.000000e+00 : f32
    %32 = vector.broadcast %cst_23 : f32 to vector<2x1xf32>
    %33 = arith.maximumf %22, %32 : vector<2x1xf32>
    %34 = arith.mulf %31, %22 : vector<2x1xf32>
    %35 = arith.subf %33, %34 : vector<2x1xf32>
    %36 = math.absf %22 : vector<2x1xf32>
    %cst_24 = arith.constant 0.000000e+00 : f32
    %37 = vector.broadcast %cst_24 : f32 to vector<2x1xf32>
    %38 = arith.subf %37, %36 : vector<2x1xf32>
    %39 = math.exp %38 : vector<2x1xf32>
    %cst_25 = arith.constant 1.000000e+00 : f32
    %40 = vector.broadcast %cst_25 : f32 to vector<2x1xf32>
    %41 = arith.addf %40, %39 : vector<2x1xf32>
    %42 = math.log %41 : vector<2x1xf32>
    %43 = arith.addf %35, %42 : vector<2x1xf32>
    %c0_26 = arith.constant 0 : index
    %c0_27 = arith.constant 0 : index
    %44 = vector.load %arg10[%c0_26, %c0_27] : memref<2x1xf32, #tpu.memory_space<vmem>>, vector<2x1xf32>
    tpu.vector_store %arg10[%c0_26, %c0_27], %43 {strides = array<i32>} : memref<2x1xf32, #tpu.memory_space<vmem>>, vector<2x1xf32>,
    return
  }
  func.func @transform_0(%arg0: i32) -> (i32, i32) {
    %c0_i32 = arith.constant 0 : i32
    %c0_i32_0 = arith.constant 0 : i32
    return %arg0, %c0_i32 : i32, i32
  }
  func.func @transform_1(%arg0: i32) -> (i32, i32) {
    %c0_i32 = arith.constant 0 : i32
    %c0_i32_0 = arith.constant 0 : i32
    %c0_i32_1 = arith.constant 0 : i32
    return %c0_i32, %c0_i32_0 : i32, i32
  }
  func.func @transform_2(%arg0: i32) -> (i32, i32) {
    %c0_i32 = arith.constant 0 : i32
    %c0_i32_0 = arith.constant 0 : i32
    %c0_i32_1 = arith.constant 0 : i32
    return %c0_i32, %c0_i32_0 : i32, i32
  }
  func.func @transform_3(%arg0: i32) -> (i32, i32) {
    %c0_i32 = arith.constant 0 : i32
    %c0_i32_0 = arith.constant 0 : i32
    %c0_i32_1 = arith.constant 0 : i32
    return %c0_i32, %c0_i32_0 : i32, i32
  }
  func.func @transform_4(%arg0: i32) -> (i32, i32) {
    %c0_i32 = arith.constant 0 : i32
    %c0_i32_0 = arith.constant 0 : i32
    %c0_i32_1 = arith.constant 0 : i32
    return %c0_i32, %c0_i32_0 : i32, i32
  }
  func.func @transform_5(%arg0: i32) -> (i32, i32) {
    %c0_i32 = arith.constant 0 : i32
    %c0_i32_0 = arith.constant 0 : i32
    %c0_i32_1 = arith.constant 0 : i32
    return %c0_i32, %c0_i32_0 : i32, i32
  }
  func.func @transform_6(%arg0: i32) -> (i32, i32) {
    %c0_i32 = arith.constant 0 : i32
    %c0_i32_0 = arith.constant 0 : i32
    %c0_i32_1 = arith.constant 0 : i32
    return %c0_i32, %c0_i32_0 : i32, i32
  }
  func.func @transform_7(%arg0: i32) -> (i32, i32) {
    %c0_i32 = arith.constant 0 : i32
    %c0_i32_0 = arith.constant 0 : i32
    return %arg0, %c0_i32 : i32, i32
  }
  func.func @transform_8(%arg0: i32) -> (i32, i32) {
    %c0_i32 = arith.constant 0 : i32
    %c0_i32_0 = arith.constant 0 : i32
    return %arg0, %c0_i32 : i32, i32
  }
  func.func @transform_9(%arg0: i32) -> (i32, i32) {
    %c0_i32 = arith.constant 0 : i32
    %c0_i32_0 = arith.constant 0 : i32
    return %arg0, %c0_i32 : i32, i32
  }
}

</mosaic_0001>

<llo_original>
// kernel: siamese_forward.1
$region0: #{siamese_forward.1}
  #allocation0 [shape = 'u32[]', space=smem, size = 0x4, offset = 0x4, fixed_abs, tag = 'smem constant byte address 0x4 - core index']
  #allocation1 [shape = 'u32[144,128]{1,0:T(1,128)}', space=vmem, size = 0x12000, scoped, tag = 'internal scratch']
  #allocation2 [shape = 'f32[1,1]{1,0:T(1,128)S(6)}', space=smem, size = 0x200, scoped, tag = 'scoped memory for siamese_forward.1']
  %s0 = inlined_call_operand.vmem [shape: bf16[2,768], index: 0, kind: input, shape index: {}]
  %s1 = inlined_call_operand.vmem [shape: bf16[768,768], index: 1, kind: input, shape index: {}]
  %s2 = inlined_call_operand.vmem [shape: f32[1,768], index: 2, kind: input, shape index: {}]
  %s3 = inlined_call_operand.vmem [shape: bf16[768,128], index: 3, kind: input, shape index: {}]
  %s4 = inlined_call_operand.vmem [shape: f32[1,128], index: 4, kind: input, shape index: {}]
  %s5 = inlined_call_operand.vmem [shape: f32[1,128], index: 5, kind: input, shape index: {}]
  %s6 = inlined_call_operand.<no memory space> [shape: f32[1,1], index: 6, kind: input, shape index: {}]
  %s7 = inlined_call_operand.vmem [shape: f32[2,1], index: 7, kind: input, shape index: {}]
  %s8 = inlined_call_operand.vmem [shape: f32[2,1], index: 8, kind: output, shape index: {0}]
  %s9 = inlined_call_operand.vmem [shape: f32[2,1], index: 9, kind: output, shape index: {1}]
  %10 = xla_tuple %s8, %s9
  %s11 = sld [smem:[#allocation0]]
  $region50: #{siamese_forward.1} parent=0
    _
  %s13 = ssub.s32 1, %s11
  %s14 = scalar_select 0, %s13, %s11
  %15 = sst [smem:[#allocation2]] %s6
  // Predicated region
  $region2: #{siamese_forward.1} parent=0 // pred_check
    _
  $region3: #{siamese_forward.1} parent=0 // pred_check_branch
    %17 = sbr.rel (0) target = $region5
  $region4: #{siamese_forward.1} parent=0 // pred_region
    _
  $region5: #{siamese_forward.1} parent=0 // pred_fallthru
    _
  // Predicated region
  $region6: #{siamese_forward.1} parent=0 // pred_check
    _
  $region7: #{siamese_forward.1} parent=0 // pred_check_branch
    %19 = sbr.rel (0) target = $region9
  $region8: #{siamese_forward.1} parent=0 // pred_region
    _
  $region9: #{siamese_forward.1} parent=0 // pred_fallthru
    _
  // Predicated region
  $region10: #{siamese_forward.1} parent=0 // pred_check
    _
  $region11: #{siamese_forward.1} parent=0 // pred_check_branch
    %21 = sbr.rel (0) target = $region13
  $region12: #{siamese_forward.1} parent=0 // pred_region
    _
  $region13: #{siamese_forward.1} parent=0 // pred_fallthru
    _
  // Predicated region
  $region14: #{siamese_forward.1} parent=0 // pred_check
    _
  $region15: #{siamese_forward.1} parent=0 // pred_check_branch
    %23 = sbr.rel (0) target = $region17
  $region16: #{siamese_forward.1} parent=0 // pred_region
    _
  $region17: #{siamese_forward.1} parent=0 // pred_fallthru
    _
  // Predicated region
  $region18: #{siamese_forward.1} parent=0 // pred_check
    _
  $region19: #{siamese_forward.1} parent=0 // pred_check_branch
    %25 = sbr.rel (0) target = $region21
  $region20: #{siamese_forward.1} parent=0 // pred_region
    _
  $region21: #{siamese_forward.1} parent=0 // pred_fallthru
    _
  // Predicated region
  $region22: #{siamese_forward.1} parent=0 // pred_check
    _
  $region23: #{siamese_forward.1} parent=0 // pred_check_branch
    %27 = sbr.rel (0) target = $region25
  $region24: #{siamese_forward.1} parent=0 // pred_region
    _
  $region25: #{siamese_forward.1} parent=0 // pred_fallthru
    _
  // Predicated region
  $region26: #{siamese_forward.1} parent=0 // pred_check
    _
  $region27: #{siamese_forward.1} parent=0 // pred_check_branch
    %29 = sbr.rel (0) target = $region29
  $region28: #{siamese_forward.1} parent=0 // pred_region
    _
  $region29: #{siamese_forward.1} parent=0 // pred_fallthru
    _
  // Predicated region
  $region30: #{siamese_forward.1} parent=0 // pred_check
    _
  $region31: #{siamese_forward.1} parent=0 // pred_check_branch
    %31 = sbr.rel (0) target = $region33
  $region32: #{siamese_forward.1} parent=0 // pred_region
    _
  $region33: #{siamese_forward.1} parent=0 // pred_fallthru
    _
  %v33 = vld [vmem:[%s0] sm:$0x3f]
  %v34 = vld [vmem:[%s1] sm:$0xff]
  %v35 = vld [vmem:[%s1 + $0x8] sm:$0xff]
  %v36 = vld [vmem:[%s1 + $0x10] sm:$0xff]
  %v37 = vld [vmem:[%s1 + $0x18] sm:$0xff]
  %v38 = vld [vmem:[%s1 + $0x20] sm:$0xff]
  %v39 = vld [vmem:[%s1 + $0x28] sm:$0xff]
  %v40 = vld [vmem:[%s1 + $0x30] sm:$0xff]
  %v41 = vld [vmem:[%s1 + $0x38] sm:$0xff]
  %v42 = vld [vmem:[%s1 + $0x40] sm:$0xff]
  %v43 = vld [vmem:[%s1 + $0x48] sm:$0xff]
  %v44 = vld [vmem:[%s1 + $0x50] sm:$0xff]
  %v45 = vld [vmem:[%s1 + $0x58] sm:$0xff]
  %v46 = vld [vmem:[%s1 + $0x60] sm:$0xff]
  %v47 = vld [vmem:[%s1 + $0x68] sm:$0xff]
  %v48 = vld [vmem:[%s1 + $0x70] sm:$0xff]
  %v49 = vld [vmem:[%s1 + $0x78] sm:$0xff]
  %v50 = vld [vmem:[%s1 + $0x80] sm:$0xff]
  %v51 = vld [vmem:[%s1 + $0x88] sm:$0xff]
  %v52 = vld [vmem:[%s1 + $0x90] sm:$0xff]
  %v53 = vld [vmem:[%s1 + $0x98] sm:$0xff]
  %v54 = vld [vmem:[%s1 + $0xa0] sm:$0xff]
  %v55 = vld [vmem:[%s1 + $0xa8] sm:$0xff]
  %v56 = vld [vmem:[%s1 + $0xb0] sm:$0xff]
  %v57 = vld [vmem:[%s1 + $0xb8] sm:$0xff]
  %v58 = vld [vmem:[%s1 + $0xc0] sm:$0xff]
  %v59 = vld [vmem:[%s1 + $0xc8] sm:$0xff]
  %v60 = vld [vmem:[%s1 + $0xd0] sm:$0xff]
  %v61 = vld [vmem:[%s1 + $0xd8] sm:$0xff]
  %v62 = vld [vmem:[%s1 + $0xe0] sm:$0xff]
  %v63 = vld [vmem:[%s1 + $0xe8] sm:$0xff]
  %v64 = vld [vmem:[%s1 + $0xf0] sm:$0xff]
  %v65 = vld [vmem:[%s1 + $0xf8] sm:$0xff]
  %v66 = vld [vmem:[%s1 + $0x100] sm:$0xff]
  %v67 = vld [vmem:[%s1 + $0x108] sm:$0xff]
  %v68 = vld [vmem:[%s1 + $0x110] sm:$0xff]
  %v69 = vld [vmem:[%s1 + $0x118] sm:$0xff]
  %v70 = vld [vmem:[%s1 + $0x120] sm:$0xff]
  %v71 = vld [vmem:[%s1 + $0x128] sm:$0xff]
  %v72 = vld [vmem:[%s1 + $0x130] sm:$0xff]
  %v73 = vld [vmem:[%s1 + $0x138] sm:$0xff]
  %v74 = vld [vmem:[%s1 + $0x140] sm:$0xff]
  %v75 = vld [vmem:[%s1 + $0x148] sm:$0xff]
  %v76 = vld [vmem:[%s1 + $0x150] sm:$0xff]
  %v77 = vld [vmem:[%s1 + $0x158] sm:$0xff]
  %v78 = vld [vmem:[%s1 + $0x160] sm:$0xff]
  %v79 = vld [vmem:[%s1 + $0x168] sm:$0xff]
  %v80 = vld [vmem:[%s1 + $0x170] sm:$0xff]
  %v81 = vld [vmem:[%s1 + $0x178] sm:$0xff]
  %v82 = vld [vmem:[%s1 + $0x180] sm:$0xff]
  %v83 = vld [vmem:[%s1 + $0x188] sm:$0xff]
  %v84 = vld [vmem:[%s1 + $0x190] sm:$0xff]
  %v85 = vld [vmem:[%s1 + $0x198] sm:$0xff]
  %v86 = vld [vmem:[%s1 + $0x1a0] sm:$0xff]
  %v87 = vld [vmem:[%s1 + $0x1a8] sm:$0xff]
  %v88 = vld [vmem:[%s1 + $0x1b0] sm:$0xff]
  %v89 = vld [vmem:[%s1 + $0x1b8] sm:$0xff]
  %v90 = vld [vmem:[%s1 + $0x1c0] sm:$0xff]
  %v91 = vld [vmem:[%s1 + $0x1c8] sm:$0xff]
  %v92 = vld [vmem:[%s1 + $0x1d0] sm:$0xff]
  %v93 = vld [vmem:[%s1 + $0x1d8] sm:$0xff]
  %v94 = vld [vmem:[%s1 + $0x1e0] sm:$0xff]
  %v95 = vld [vmem:[%s1 + $0x1e8] sm:$0xff]
  %v96 = vld [vmem:[%s1 + $0x1f0] sm:$0xff]
  %v97 = vld [vmem:[%s1 + $0x1f8] sm:$0xff]
  %v98 = vld [vmem:[%s1 + $0x200] sm:$0xff]
  %v99 = vld [vmem:[%s1 + $0x208] sm:$0xff]
  %v100 = vld [vmem:[%s1 + $0x210] sm:$0xff]
  %v101 = vld [vmem:[%s1 + $0x218] sm:$0xff]
  %v102 = vld [vmem:[%s1 + $0x220] sm:$0xff]
  %v103 = vld [vmem:[%s1 + $0x228] sm:$0xff]
  %v104 = vld [vmem:[%s1 + $0x230] sm:$0xff]
  %v105 = vld [vmem:[%s1 + $0x238] sm:$0xff]
  %v106 = vld [vmem:[%s1 + $0x240] sm:$0xff]
  %v107 = vld [vmem:[%s1 + $0x248] sm:$0xff]
  %v108 = vld [vmem:[%s1 + $0x250] sm:$0xff]
  %v109 = vld [vmem:[%s1 + $0x258] sm:$0xff]
  %v110 = vld [vmem:[%s1 + $0x260] sm:$0xff]
  %v111 = vld [vmem:[%s1 + $0x268] sm:$0xff]
  %v112 = vld [vmem:[%s1 + $0x270] sm:$0xff]
  %v113 = vld [vmem:[%s1 + $0x278] sm:$0xff]
  %v114 = vld [vmem:[%s1 + $0x280] sm:$0xff]
  %v115 = vld [vmem:[%s1 + $0x288] sm:$0xff]
  %v116 = vld [vmem:[%s1 + $0x290] sm:$0xff]
  %v117 = vld [vmem:[%s1 + $0x298] sm:$0xff]
  %v118 = vld [vmem:[%s1 + $0x2a0] sm:$0xff]
  %v119 = vld [vmem:[%s1 + $0x2a8] sm:$0xff]
  %v120 = vld [vmem:[%s1 + $0x2b0] sm:$0xff]
  %v121 = vld [vmem:[%s1 + $0x2b8] sm:$0xff]
  %v122 = vld [vmem:[%s1 + $0x2c0] sm:$0xff]
  %v123 = vld [vmem:[%s1 + $0x2c8] sm:$0xff]
  %v124 = vld [vmem:[%s1 + $0x2d0] sm:$0xff]
  %v125 = vld [vmem:[%s1 + $0x2d8] sm:$0xff]
  %v126 = vld [vmem:[%s1 + $0x2e0] sm:$0xff]
  %v127 = vld [vmem:[%s1 + $0x2e8] sm:$0xff]
  %v128 = vld [vmem:[%s1 + $0x2f0] sm:$0xff]
  %v129 = vld [vmem:[%s1 + $0x2f8] sm:$0xff]
  %v130 = vld [vmem:[%s1 + $0x300] sm:$0xff]
  %v131 = vld [vmem:[%s1 + $0x308] sm:$0xff]
  %v132 = vld [vmem:[%s1 + $0x310] sm:$0xff]
  %v133 = vld [vmem:[%s1 + $0x318] sm:$0xff]
  %v134 = vld [vmem:[%s1 + $0x320] sm:$0xff]
  %v135 = vld [vmem:[%s1 + $0x328] sm:$0xff]
  %v136 = vld [vmem:[%s1 + $0x330] sm:$0xff]
  %v137 = vld [vmem:[%s1 + $0x338] sm:$0xff]
  %v138 = vld [vmem:[%s1 + $0x340] sm:$0xff]
  %v139 = vld [vmem:[%s1 + $0x348] sm:$0xff]
  %v140 = vld [vmem:[%s1 + $0x350] sm:$0xff]
  %v141 = vld [vmem:[%s1 + $0x358] sm:$0xff]
  %v142 = vld [vmem:[%s1 + $0x360] sm:$0xff]
  %v143 = vld [vmem:[%s1 + $0x368] sm:$0xff]
  %v144 = vld [vmem:[%s1 + $0x370] sm:$0xff]
  %v145 = vld [vmem:[%s1 + $0x378] sm:$0xff]
  %v146 = vld [vmem:[%s1 + $0x380] sm:$0xff]
  %v147 = vld [vmem:[%s1 + $0x388] sm:$0xff]
  %v148 = vld [vmem:[%s1 + $0x390] sm:$0xff]
  %v149 = vld [vmem:[%s1 + $0x398] sm:$0xff]
  %v150 = vld [vmem:[%s1 + $0x3a0] sm:$0xff]
  %v151 = vld [vmem:[%s1 + $0x3a8] sm:$0xff]
  %v152 = vld [vmem:[%s1 + $0x3b0] sm:$0xff]
  %v153 = vld [vmem:[%s1 + $0x3b8] sm:$0xff]
  %v154 = vld [vmem:[%s1 + $0x3c0] sm:$0xff]
  %v155 = vld [vmem:[%s1 + $0x3c8] sm:$0xff]
  %v156 = vld [vmem:[%s1 + $0x3d0] sm:$0xff]
  %v157 = vld [vmem:[%s1 + $0x3d8] sm:$0xff]
  %v158 = vld [vmem:[%s1 + $0x3e0] sm:$0xff]
  %v159 = vld [vmem:[%s1 + $0x3e8] sm:$0xff]
  %v160 = vld [vmem:[%s1 + $0x3f0] sm:$0xff]
  %v161 = vld [vmem:[%s1 + $0x3f8] sm:$0xff]
  %v162 = vld [vmem:[%s1 + $0x400] sm:$0xff]
  %v163 = vld [vmem:[%s1 + $0x408] sm:$0xff]
  %v164 = vld [vmem:[%s1 + $0x410] sm:$0xff]
  %v165 = vld [vmem:[%s1 + $0x418] sm:$0xff]
  %v166 = vld [vmem:[%s1 + $0x420] sm:$0xff]
  %v167 = vld [vmem:[%s1 + $0x428] sm:$0xff]
  %v168 = vld [vmem:[%s1 + $0x430] sm:$0xff]
  %v169 = vld [vmem:[%s1 + $0x438] sm:$0xff]
  %v170 = vld [vmem:[%s1 + $0x440] sm:$0xff]
  %v171 = vld [vmem:[%s1 + $0x448] sm:$0xff]
  %v172 = vld [vmem:[%s1 + $0x450] sm:$0xff]
  %v173 = vld [vmem:[%s1 + $0x458] sm:$0xff]
  %v174 = vld [vmem:[%s1 + $0x460] sm:$0xff]
  %v175 = vld [vmem:[%s1 + $0x468] sm:$0xff]
  %v176 = vld [vmem:[%s1 + $0x470] sm:$0xff]
  %v177 = vld [vmem:[%s1 + $0x478] sm:$0xff]
  %v178 = vld [vmem:[%s1 + $0x480] sm:$0xff]
  %v179 = vld [vmem:[%s1 + $0x488] sm:$0xff]
  %v180 = vld [vmem:[%s1 + $0x490] sm:$0xff]
  %v181 = vld [vmem:[%s1 + $0x498] sm:$0xff]
  %v182 = vld [vmem:[%s1 + $0x4a0] sm:$0xff]
  %v183 = vld [vmem:[%s1 + $0x4a8] sm:$0xff]
  %v184 = vld [vmem:[%s1 + $0x4b0] sm:$0xff]
  %v185 = vld [vmem:[%s1 + $0x4b8] sm:$0xff]
  %v186 = vld [vmem:[%s1 + $0x4c0] sm:$0xff]
  %v187 = vld [vmem:[%s1 + $0x4c8] sm:$0xff]
  %v188 = vld [vmem:[%s1 + $0x4d0] sm:$0xff]
  %v189 = vld [vmem:[%s1 + $0x4d8] sm:$0xff]
  %v190 = vld [vmem:[%s1 + $0x4e0] sm:$0xff]
  %v191 = vld [vmem:[%s1 + $0x4e8] sm:$0xff]
  %v192 = vld [vmem:[%s1 + $0x4f0] sm:$0xff]
  %v193 = vld [vmem:[%s1 + $0x4f8] sm:$0xff]
  %v194 = vld [vmem:[%s1 + $0x500] sm:$0xff]
  %v195 = vld [vmem:[%s1 + $0x508] sm:$0xff]
  %v196 = vld [vmem:[%s1 + $0x510] sm:$0xff]
  %v197 = vld [vmem:[%s1 + $0x518] sm:$0xff]
  %v198 = vld [vmem:[%s1 + $0x520] sm:$0xff]
  %v199 = vld [vmem:[%s1 + $0x528] sm:$0xff]
  %v200 = vld [vmem:[%s1 + $0x530] sm:$0xff]
  %v201 = vld [vmem:[%s1 + $0x538] sm:$0xff]
  %v202 = vld [vmem:[%s1 + $0x540] sm:$0xff]
  %v203 = vld [vmem:[%s1 + $0x548] sm:$0xff]
  %v204 = vld [vmem:[%s1 + $0x550] sm:$0xff]
  %v205 = vld [vmem:[%s1 + $0x558] sm:$0xff]
  %v206 = vld [vmem:[%s1 + $0x560] sm:$0xff]
  %v207 = vld [vmem:[%s1 + $0x568] sm:$0xff]
  %v208 = vld [vmem:[%s1 + $0x570] sm:$0xff]
  %v209 = vld [vmem:[%s1 + $0x578] sm:$0xff]
  %v210 = vld [vmem:[%s1 + $0x580] sm:$0xff]
  %v211 = vld [vmem:[%s1 + $0x588] sm:$0xff]
  %v212 = vld [vmem:[%s1 + $0x590] sm:$0xff]
  %v213 = vld [vmem:[%s1 + $0x598] sm:$0xff]
  %v214 = vld [vmem:[%s1 + $0x5a0] sm:$0xff]
  %v215 = vld [vmem:[%s1 + $0x5a8] sm:$0xff]
  %v216 = vld [vmem:[%s1 + $0x5b0] sm:$0xff]
  %v217 = vld [vmem:[%s1 + $0x5b8] sm:$0xff]
  %v218 = vld [vmem:[%s1 + $0x5c0] sm:$0xff]
  %v219 = vld [vmem:[%s1 + $0x5c8] sm:$0xff]
  %v220 = vld [vmem:[%s1 + $0x5d0] sm:$0xff]
  %v221 = vld [vmem:[%s1 + $0x5d8] sm:$0xff]
  %v222 = vld [vmem:[%s1 + $0x5e0] sm:$0xff]
  %v223 = vld [vmem:[%s1 + $0x5e8] sm:$0xff]
  %v224 = vld [vmem:[%s1 + $0x5f0] sm:$0xff]
  %v225 = vld [vmem:[%s1 + $0x5f8] sm:$0xff]
  %v226 = vld [vmem:[%s1 + $0x600] sm:$0xff]
  %v227 = vld [vmem:[%s1 + $0x608] sm:$0xff]
  %v228 = vld [vmem:[%s1 + $0x610] sm:$0xff]
  %v229 = vld [vmem:[%s1 + $0x618] sm:$0xff]
  %v230 = vld [vmem:[%s1 + $0x620] sm:$0xff]
  %v231 = vld [vmem:[%s1 + $0x628] sm:$0xff]
  %v232 = vld [vmem:[%s1 + $0x630] sm:$0xff]
  %v233 = vld [vmem:[%s1 + $0x638] sm:$0xff]
  %v234 = vld [vmem:[%s1 + $0x640] sm:$0xff]
  %v235 = vld [vmem:[%s1 + $0x648] sm:$0xff]
  %v236 = vld [vmem:[%s1 + $0x650] sm:$0xff]
  %v237 = vld [vmem:[%s1 + $0x658] sm:$0xff]
  %v238 = vld [vmem:[%s1 + $0x660] sm:$0xff]
  %v239 = vld [vmem:[%s1 + $0x668] sm:$0xff]
  %v240 = vld [vmem:[%s1 + $0x670] sm:$0xff]
  %v241 = vld [vmem:[%s1 + $0x678] sm:$0xff]
  %v242 = vld [vmem:[%s1 + $0x680] sm:$0xff]
  %v243 = vld [vmem:[%s1 + $0x688] sm:$0xff]
  %v244 = vld [vmem:[%s1 + $0x690] sm:$0xff]
  %v245 = vld [vmem:[%s1 + $0x698] sm:$0xff]
  %v246 = vld [vmem:[%s1 + $0x6a0] sm:$0xff]
  %v247 = vld [vmem:[%s1 + $0x6a8] sm:$0xff]
  %v248 = vld [vmem:[%s1 + $0x6b0] sm:$0xff]
  %v249 = vld [vmem:[%s1 + $0x6b8] sm:$0xff]
  %v250 = vld [vmem:[%s1 + $0x6c0] sm:$0xff]
  %v251 = vld [vmem:[%s1 + $0x6c8] sm:$0xff]
  %v252 = vld [vmem:[%s1 + $0x6d0] sm:$0xff]
  %v253 = vld [vmem:[%s1 + $0x6d8] sm:$0xff]
  %v254 = vld [vmem:[%s1 + $0x6e0] sm:$0xff]
  %v255 = vld [vmem:[%s1 + $0x6e8] sm:$0xff]
  %v256 = vld [vmem:[%s1 + $0x6f0] sm:$0xff]
  %v257 = vld [vmem:[%s1 + $0x6f8] sm:$0xff]
  %v258 = vld [vmem:[%s1 + $0x700] sm:$0xff]
  %v259 = vld [vmem:[%s1 + $0x708] sm:$0xff]
  %v260 = vld [vmem:[%s1 + $0x710] sm:$0xff]
  %v261 = vld [vmem:[%s1 + $0x718] sm:$0xff]
  %v262 = vld [vmem:[%s1 + $0x720] sm:$0xff]
  %v263 = vld [vmem:[%s1 + $0x728] sm:$0xff]
  %v264 = vld [vmem:[%s1 + $0x730] sm:$0xff]
  %v265 = vld [vmem:[%s1 + $0x738] sm:$0xff]
  %v266 = vld [vmem:[%s1 + $0x740] sm:$0xff]
  %v267 = vld [vmem:[%s1 + $0x748] sm:$0xff]
  %v268 = vld [vmem:[%s1 + $0x750] sm:$0xff]
  %v269 = vld [vmem:[%s1 + $0x758] sm:$0xff]
  %v270 = vld [vmem:[%s1 + $0x760] sm:$0xff]
  %v271 = vld [vmem:[%s1 + $0x768] sm:$0xff]
  %v272 = vld [vmem:[%s1 + $0x770] sm:$0xff]
  %v273 = vld [vmem:[%s1 + $0x778] sm:$0xff]
  %v274 = vld [vmem:[%s1 + $0x780] sm:$0xff]
  %v275 = vld [vmem:[%s1 + $0x788] sm:$0xff]
  %v276 = vld [vmem:[%s1 + $0x790] sm:$0xff]
  %v277 = vld [vmem:[%s1 + $0x798] sm:$0xff]
  %v278 = vld [vmem:[%s1 + $0x7a0] sm:$0xff]
  %v279 = vld [vmem:[%s1 + $0x7a8] sm:$0xff]
  %v280 = vld [vmem:[%s1 + $0x7b0] sm:$0xff]
  %v281 = vld [vmem:[%s1 + $0x7b8] sm:$0xff]
  %v282 = vld [vmem:[%s1 + $0x7c0] sm:$0xff]
  %v283 = vld [vmem:[%s1 + $0x7c8] sm:$0xff]
  %v284 = vld [vmem:[%s1 + $0x7d0] sm:$0xff]
  %v285 = vld [vmem:[%s1 + $0x7d8] sm:$0xff]
  %v286 = vld [vmem:[%s1 + $0x7e0] sm:$0xff]
  %v287 = vld [vmem:[%s1 + $0x7e8] sm:$0xff]
  %v288 = vld [vmem:[%s1 + $0x7f0] sm:$0xff]
  %v289 = vld [vmem:[%s1 + $0x7f8] sm:$0xff]
  %v290 = vld [vmem:[%s1 + $0x800] sm:$0xff]
  %v291 = vld [vmem:[%s1 + $0x808] sm:$0xff]
  %v292 = vld [vmem:[%s1 + $0x810] sm:$0xff]
  %v293 = vld [vmem:[%s1 + $0x818] sm:$0xff]
  %v294 = vld [vmem:[%s1 + $0x820] sm:$0xff]
  %v295 = vld [vmem:[%s1 + $0x828] sm:$0xff]
  %v296 = vld [vmem:[%s1 + $0x830] sm:$0xff]
  %v297 = vld [vmem:[%s1 + $0x838] sm:$0xff]
  %v298 = vld [vmem:[%s1 + $0x840] sm:$0xff]
  %v299 = vld [vmem:[%s1 + $0x848] sm:$0xff]
  %v300 = vld [vmem:[%s1 + $0x850] sm:$0xff]
  %v301 = vld [vmem:[%s1 + $0x858] sm:$0xff]
  %v302 = vld [vmem:[%s1 + $0x860] sm:$0xff]
  %v303 = vld [vmem:[%s1 + $0x868] sm:$0xff]
  %v304 = vld [vmem:[%s1 + $0x870] sm:$0xff]
  %v305 = vld [vmem:[%s1 + $0x878] sm:$0xff]
  %v306 = vld [vmem:[%s1 + $0x880] sm:$0xff]
  %v307 = vld [vmem:[%s1 + $0x888] sm:$0xff]
  %v308 = vld [vmem:[%s1 + $0x890] sm:$0xff]
  %v309 = vld [vmem:[%s1 + $0x898] sm:$0xff]
  %v310 = vld [vmem:[%s1 + $0x8a0] sm:$0xff]
  %v311 = vld [vmem:[%s1 + $0x8a8] sm:$0xff]
  %v312 = vld [vmem:[%s1 + $0x8b0] sm:$0xff]
  %v313 = vld [vmem:[%s1 + $0x8b8] sm:$0xff]
  %v314 = vld [vmem:[%s1 + $0x8c0] sm:$0xff]
  %v315 = vld [vmem:[%s1 + $0x8c8] sm:$0xff]
  %v316 = vld [vmem:[%s1 + $0x8d0] sm:$0xff]
  %v317 = vld [vmem:[%s1 + $0x8d8] sm:$0xff]
  %v318 = vld [vmem:[%s1 + $0x8e0] sm:$0xff]
  %v319 = vld [vmem:[%s1 + $0x8e8] sm:$0xff]
  %v320 = vld [vmem:[%s1 + $0x8f0] sm:$0xff]
  %v321 = vld [vmem:[%s1 + $0x8f8] sm:$0xff]
  %v322 = vld [vmem:[%s2] sm:$0x3f]
  %v324 = vlaneseq
  %v325 = vshrl.u32 %v324, 7
  %v326 = vsub.s32 0, %v325
  %v327 = vrot.slane %v322, %v326
  %v328 = vlaneseq
  %v329 = vshrl.u32 %v328, 7
  %v330 = vsub.s32 1, %v329
  %v331 = vrot.slane %v322, %v330
  %v332 = vlaneseq
  %v333 = vshrl.u32 %v332, 7
  %v334 = vsub.s32 2, %v333
  %v335 = vrot.slane %v322, %v334
  %v336 = vlaneseq
  %v337 = vshrl.u32 %v336, 7
  %v338 = vsub.s32 3, %v337
  %v339 = vrot.slane %v322, %v338
  %v340 = vlaneseq
  %v341 = vshrl.u32 %v340, 7
  %v342 = vsub.s32 4, %v341
  %v343 = vrot.slane %v322, %v342
  %v344 = vlaneseq
  %v345 = vshrl.u32 %v344, 7
  %v346 = vsub.s32 5, %v345
  %v347 = vrot.slane %v322, %v346
  %v355 = vcombine.high %v33, %v33
  %v357 = vunpack.c.l.s4 1966171168
  %v358 = vunpack.c.0.s8 %v357
  %v359 = vlaneseq
  %v360 = vshrl.u32 %v359, 7
  %v361 = vsub.s32 %v358, %v360
  %v362 = vrot.slane %v33, %v361
  %v364 = vunpack.c.l.s4 1966171168
  %v365 = vunpack.c.0.s8 %v364
  %v366 = vlaneseq
  %v367 = vshrl.u32 %v366, 7
  %v368 = vsub.s32 %v365, %v367
  %v369 = vrot.slane %v355, %v368
  %v370 = vcombine.high %v362, %v362
  %v371 = vcombine.high %v369, %v369
  %v373 = vunpack.c.l.s4 1966171168
  %v374 = vunpack.c.0.s8 %v373
  %v375 = vlaneseq
  %v376 = vshrl.u32 %v375, 7
  %v377 = vsub.s32 %v374, %v376
  %v378 = vrot.slane %v362, %v377
  %v380 = vunpack.c.l.s4 1966171168
  %v381 = vunpack.c.0.s8 %v380
  %v382 = vlaneseq
  %v383 = vshrl.u32 %v382, 7
  %v384 = vsub.s32 %v381, %v383
  %v385 = vrot.slane %v369, %v384
  %v387 = vunpack.c.l.s4 1966171168
  %v388 = vunpack.c.0.s8 %v387
  %v389 = vlaneseq
  %v390 = vshrl.u32 %v389, 7
  %v391 = vsub.s32 %v388, %v390
  %v392 = vrot.slane %v370, %v391
  %v394 = vunpack.c.l.s4 1966171168
  %v395 = vunpack.c.0.s8 %v394
  %v396 = vlaneseq
  %v397 = vshrl.u32 %v396, 7
  %v398 = vsub.s32 %v395, %v397
  %v399 = vrot.slane %v371, %v398
  %v400 = vcombine.high %v378, %v378
  %v401 = vcombine.high %v392, %v392
  %v696 = vunpack.c.l.b16 %v34
  %v697 = vunpack.c.h.b16 %v34
  %v698 = vunpack.c.l.b16 %v35
  %v699 = vunpack.c.h.b16 %v35
  %v700 = vunpack.c.l.b16 %v36
  %v701 = vunpack.c.h.b16 %v36
  %v702 = vunpack.c.l.b16 %v37
  %v703 = vunpack.c.h.b16 %v37
  %v704 = vunpack.c.l.b16 %v38
  %v705 = vunpack.c.h.b16 %v38
  %v706 = vunpack.c.l.b16 %v39
  %v707 = vunpack.c.h.b16 %v39
  %v708 = vunpack.c.l.b16 %v40
  %v709 = vunpack.c.h.b16 %v40
  %v710 = vunpack.c.l.b16 %v41
  %v711 = vunpack.c.h.b16 %v41
  %v712 = vunpack.c.l.b16 %v42
  %v713 = vunpack.c.h.b16 %v42
  %v714 = vunpack.c.l.b16 %v43
  %v715 = vunpack.c.h.b16 %v43
  %v716 = vunpack.c.l.b16 %v44
  %v717 = vunpack.c.h.b16 %v44
  %v718 = vunpack.c.l.b16 %v45
  %v719 = vunpack.c.h.b16 %v45
  %v720 = vunpack.c.l.b16 %v46
  %v721 = vunpack.c.h.b16 %v46
  %v722 = vunpack.c.l.b16 %v47
  %v723 = vunpack.c.h.b16 %v47
  %v724 = vunpack.c.l.b16 %v48
  %v725 = vunpack.c.h.b16 %v48
  %v726 = vunpack.c.l.b16 %v49
  %v727 = vunpack.c.h.b16 %v49
  %v728 = vunpack.c.l.b16 %v50
  %v729 = vunpack.c.h.b16 %v50
  %v730 = vunpack.c.l.b16 %v51
  %v731 = vunpack.c.h.b16 %v51
  %v732 = vunpack.c.l.b16 %v52
  %v733 = vunpack.c.h.b16 %v52
  %v734 = vunpack.c.l.b16 %v53
  %v735 = vunpack.c.h.b16 %v53
  %v736 = vunpack.c.l.b16 %v54
  %v737 = vunpack.c.h.b16 %v54
  %v738 = vunpack.c.l.b16 %v55
  %v739 = vunpack.c.h.b16 %v55
  %v740 = vunpack.c.l.b16 %v56
  %v741 = vunpack.c.h.b16 %v56
  %v742 = vunpack.c.l.b16 %v57
  %v743 = vunpack.c.h.b16 %v57
  %v744 = vunpack.c.l.b16 %v58
  %v745 = vunpack.c.h.b16 %v58
  %v746 = vunpack.c.l.b16 %v59
  %v747 = vunpack.c.h.b16 %v59
  %v748 = vunpack.c.l.b16 %v60
  %v749 = vunpack.c.h.b16 %v60
  %v750 = vunpack.c.l.b16 %v61
  %v751 = vunpack.c.h.b16 %v61
  %v752 = vunpack.c.l.b16 %v62
  %v753 = vunpack.c.h.b16 %v62
  %v754 = vunpack.c.l.b16 %v63
  %v755 = vunpack.c.h.b16 %v63
  %v756 = vunpack.c.l.b16 %v64
  %v757 = vunpack.c.h.b16 %v64
  %v758 = vunpack.c.l.b16 %v65
  %v759 = vunpack.c.h.b16 %v65
  %v760 = vunpack.c.l.b16 %v66
  %v761 = vunpack.c.h.b16 %v66
  %v762 = vunpack.c.l.b16 %v67
  %v763 = vunpack.c.h.b16 %v67
  %v764 = vunpack.c.l.b16 %v68
  %v765 = vunpack.c.h.b16 %v68
  %v766 = vunpack.c.l.b16 %v69
  %v767 = vunpack.c.h.b16 %v69
  %v768 = vunpack.c.l.b16 %v70
  %v769 = vunpack.c.h.b16 %v70
  %v770 = vunpack.c.l.b16 %v71
  %v771 = vunpack.c.h.b16 %v71
  %v772 = vunpack.c.l.b16 %v72
  %v773 = vunpack.c.h.b16 %v72
  %v774 = vunpack.c.l.b16 %v73
  %v775 = vunpack.c.h.b16 %v73
  %v776 = vunpack.c.l.b16 %v74
  %v777 = vunpack.c.h.b16 %v74
  %v778 = vunpack.c.l.b16 %v75
  %v779 = vunpack.c.h.b16 %v75
  %v780 = vunpack.c.l.b16 %v76
  %v781 = vunpack.c.h.b16 %v76
  %v782 = vunpack.c.l.b16 %v77
  %v783 = vunpack.c.h.b16 %v77
  %v784 = vunpack.c.l.b16 %v78
  %v785 = vunpack.c.h.b16 %v78
  %v786 = vunpack.c.l.b16 %v79
  %v787 = vunpack.c.h.b16 %v79
  %v788 = vunpack.c.l.b16 %v80
  %v789 = vunpack.c.h.b16 %v80
  %v790 = vunpack.c.l.b16 %v81
  %v791 = vunpack.c.h.b16 %v81
  %v792 = vunpack.c.l.b16 %v82
  %v793 = vunpack.c.h.b16 %v82
  %v794 = vunpack.c.l.b16 %v83
  %v795 = vunpack.c.h.b16 %v83
  %v796 = vunpack.c.l.b16 %v84
  %v797 = vunpack.c.h.b16 %v84
  %v798 = vunpack.c.l.b16 %v85
  %v799 = vunpack.c.h.b16 %v85
  %v800 = vunpack.c.l.b16 %v86
  %v801 = vunpack.c.h.b16 %v86
  %v802 = vunpack.c.l.b16 %v87
  %v803 = vunpack.c.h.b16 %v87
  %v804 = vunpack.c.l.b16 %v88
  %v805 = vunpack.c.h.b16 %v88
  %v806 = vunpack.c.l.b16 %v89
  %v807 = vunpack.c.h.b16 %v89
  %v808 = vunpack.c.l.b16 %v90
  %v809 = vunpack.c.h.b16 %v90
  %v810 = vunpack.c.l.b16 %v91
  %v811 = vunpack.c.h.b16 %v91
  %v812 = vunpack.c.l.b16 %v92
  %v813 = vunpack.c.h.b16 %v92
  %v814 = vunpack.c.l.b16 %v93
  %v815 = vunpack.c.h.b16 %v93
  %v816 = vunpack.c.l.b16 %v94
  %v817 = vunpack.c.h.b16 %v94
  %v818 = vunpack.c.l.b16 %v95
  %v819 = vunpack.c.h.b16 %v95
  %v820 = vunpack.c.l.b16 %v96
  %v821 = vunpack.c.h.b16 %v96
  %v822 = vunpack.c.l.b16 %v97
  %v823 = vunpack.c.h.b16 %v97
  %v824 = vunpack.c.l.b16 %v98
  %v825 = vunpack.c.h.b16 %v98
  %v826 = vunpack.c.l.b16 %v99
  %v827 = vunpack.c.h.b16 %v99
  %v828 = vunpack.c.l.b16 %v100
  %v829 = vunpack.c.h.b16 %v100
  %v830 = vunpack.c.l.b16 %v101
  %v831 = vunpack.c.h.b16 %v101
  %v832 = vunpack.c.l.b16 %v102
  %v833 = vunpack.c.h.b16 %v102
  %v834 = vunpack.c.l.b16 %v103
  %v835 = vunpack.c.h.b16 %v103
  %v836 = vunpack.c.l.b16 %v104
  %v837 = vunpack.c.h.b16 %v104
  %v838 = vunpack.c.l.b16 %v105
  %v839 = vunpack.c.h.b16 %v105
  %v840 = vunpack.c.l.b16 %v106
  %v841 = vunpack.c.h.b16 %v106
  %v842 = vunpack.c.l.b16 %v107
  %v843 = vunpack.c.h.b16 %v107
  %v844 = vunpack.c.l.b16 %v108
  %v845 = vunpack.c.h.b16 %v108
  %v846 = vunpack.c.l.b16 %v109
  %v847 = vunpack.c.h.b16 %v109
  %v848 = vunpack.c.l.b16 %v110
  %v849 = vunpack.c.h.b16 %v110
  %v850 = vunpack.c.l.b16 %v111
  %v851 = vunpack.c.h.b16 %v111
  %v852 = vunpack.c.l.b16 %v112
  %v853 = vunpack.c.h.b16 %v112
  %v854 = vunpack.c.l.b16 %v113
  %v855 = vunpack.c.h.b16 %v113
  %v856 = vunpack.c.l.b16 %v114
  %v857 = vunpack.c.h.b16 %v114
  %v858 = vunpack.c.l.b16 %v115
  %v859 = vunpack.c.h.b16 %v115
  %v860 = vunpack.c.l.b16 %v116
  %v861 = vunpack.c.h.b16 %v116
  %v862 = vunpack.c.l.b16 %v117
  %v863 = vunpack.c.h.b16 %v117
  %v864 = vunpack.c.l.b16 %v118
  %v865 = vunpack.c.h.b16 %v118
  %v866 = vunpack.c.l.b16 %v119
  %v867 = vunpack.c.h.b16 %v119
  %v868 = vunpack.c.l.b16 %v120
  %v869 = vunpack.c.h.b16 %v120
  %v870 = vunpack.c.l.b16 %v121
  %v871 = vunpack.c.h.b16 %v121
  %v872 = vunpack.c.l.b16 %v122
  %v873 = vunpack.c.h.b16 %v122
  %v874 = vunpack.c.l.b16 %v123
  %v875 = vunpack.c.h.b16 %v123
  %v876 = vunpack.c.l.b16 %v124
  %v877 = vunpack.c.h.b16 %v124
  %v878 = vunpack.c.l.b16 %v125
  %v879 = vunpack.c.h.b16 %v125
  %v880 = vunpack.c.l.b16 %v126
  %v881 = vunpack.c.h.b16 %v126
  %v882 = vunpack.c.l.b16 %v127
  %v883 = vunpack.c.h.b16 %v127
  %v884 = vunpack.c.l.b16 %v128
  %v885 = vunpack.c.h.b16 %v128
  %v886 = vunpack.c.l.b16 %v129
  %v887 = vunpack.c.h.b16 %v129
  %v888 = vunpack.c.l.b16 %v130
  %v889 = vunpack.c.h.b16 %v130
  %v890 = vunpack.c.l.b16 %v131
  %v891 = vunpack.c.h.b16 %v131
  %v892 = vunpack.c.l.b16 %v132
  %v893 = vunpack.c.h.b16 %v132
  %v894 = vunpack.c.l.b16 %v133
  %v895 = vunpack.c.h.b16 %v133
  %v896 = vunpack.c.l.b16 %v134
  %v897 = vunpack.c.h.b16 %v134
  %v898 = vunpack.c.l.b16 %v135
  %v899 = vunpack.c.h.b16 %v135
  %v900 = vunpack.c.l.b16 %v136
  %v901 = vunpack.c.h.b16 %v136
  %v902 = vunpack.c.l.b16 %v137
  %v903 = vunpack.c.h.b16 %v137
  %v904 = vunpack.c.l.b16 %v138
  %v905 = vunpack.c.h.b16 %v138
  %v906 = vunpack.c.l.b16 %v139
  %v907 = vunpack.c.h.b16 %v139
  %v908 = vunpack.c.l.b16 %v140
  %v909 = vunpack.c.h.b16 %v140
  %v910 = vunpack.c.l.b16 %v141
  %v911 = vunpack.c.h.b16 %v141
  %v912 = vunpack.c.l.b16 %v142
  %v913 = vunpack.c.h.b16 %v142
  %v914 = vunpack.c.l.b16 %v143
  %v915 = vunpack.c.h.b16 %v143
  %v916 = vunpack.c.l.b16 %v144
  %v917 = vunpack.c.h.b16 %v144
  %v918 = vunpack.c.l.b16 %v145
  %v919 = vunpack.c.h.b16 %v145
  %v920 = vunpack.c.l.b16 %v146
  %v921 = vunpack.c.h.b16 %v146
  %v922 = vunpack.c.l.b16 %v147
  %v923 = vunpack.c.h.b16 %v147
  %v924 = vunpack.c.l.b16 %v148
  %v925 = vunpack.c.h.b16 %v148
  %v926 = vunpack.c.l.b16 %v149
  %v927 = vunpack.c.h.b16 %v149
  %v928 = vunpack.c.l.b16 %v150
  %v929 = vunpack.c.h.b16 %v150
  %v930 = vunpack.c.l.b16 %v151
  %v931 = vunpack.c.h.b16 %v151
  %v932 = vunpack.c.l.b16 %v152
  %v933 = vunpack.c.h.b16 %v152
  %v934 = vunpack.c.l.b16 %v153
  %v935 = vunpack.c.h.b16 %v153
  %v936 = vunpack.c.l.b16 %v154
  %v937 = vunpack.c.h.b16 %v154
  %v938 = vunpack.c.l.b16 %v155
  %v939 = vunpack.c.h.b16 %v155
  %v940 = vunpack.c.l.b16 %v156
  %v941 = vunpack.c.h.b16 %v156
  %v942 = vunpack.c.l.b16 %v157
  %v943 = vunpack.c.h.b16 %v157
  %v944 = vunpack.c.l.b16 %v158
  %v945 = vunpack.c.h.b16 %v158
  %v946 = vunpack.c.l.b16 %v159
  %v947 = vunpack.c.h.b16 %v159
  %v948 = vunpack.c.l.b16 %v160
  %v949 = vunpack.c.h.b16 %v160
  %v950 = vunpack.c.l.b16 %v161
  %v951 = vunpack.c.h.b16 %v161
  %v952 = vunpack.c.l.b16 %v162
  %v953 = vunpack.c.h.b16 %v162
  %v954 = vunpack.c.l.b16 %v163
  %v955 = vunpack.c.h.b16 %v163
  %v956 = vunpack.c.l.b16 %v164
  %v957 = vunpack.c.h.b16 %v164
  %v958 = vunpack.c.l.b16 %v165
  %v959 = vunpack.c.h.b16 %v165
  %v960 = vunpack.c.l.b16 %v166
  %v961 = vunpack.c.h.b16 %v166
  %v962 = vunpack.c.l.b16 %v167
  %v963 = vunpack.c.h.b16 %v167
  %v964 = vunpack.c.l.b16 %v168
  %v965 = vunpack.c.h.b16 %v168
  %v966 = vunpack.c.l.b16 %v169
  %v967 = vunpack.c.h.b16 %v169
  %v968 = vunpack.c.l.b16 %v170
  %v969 = vunpack.c.h.b16 %v170
  %v970 = vunpack.c.l.b16 %v171
  %v971 = vunpack.c.h.b16 %v171
  %v972 = vunpack.c.l.b16 %v172
  %v973 = vunpack.c.h.b16 %v172
  %v974 = vunpack.c.l.b16 %v173
  %v975 = vunpack.c.h.b16 %v173
  %v976 = vunpack.c.l.b16 %v174
  %v977 = vunpack.c.h.b16 %v174
  %v978 = vunpack.c.l.b16 %v175
  %v979 = vunpack.c.h.b16 %v175
  %v980 = vunpack.c.l.b16 %v176
  %v981 = vunpack.c.h.b16 %v176
  %v982 = vunpack.c.l.b16 %v177
  %v983 = vunpack.c.h.b16 %v177
  %v984 = vunpack.c.l.b16 %v178
  %v985 = vunpack.c.h.b16 %v178
  %v986 = vunpack.c.l.b16 %v179
  %v987 = vunpack.c.h.b16 %v179
  %v988 = vunpack.c.l.b16 %v180
  %v989 = vunpack.c.h.b16 %v180
  %v990 = vunpack.c.l.b16 %v181
  %v991 = vunpack.c.h.b16 %v181
  %v992 = vunpack.c.l.b16 %v182
  %v993 = vunpack.c.h.b16 %v182
  %v994 = vunpack.c.l.b16 %v183
  %v995 = vunpack.c.h.b16 %v183
  %v996 = vunpack.c.l.b16 %v184
  %v997 = vunpack.c.h.b16 %v184
  %v998 = vunpack.c.l.b16 %v185
  %v999 = vunpack.c.h.b16 %v185
  %v1000 = vunpack.c.l.b16 %v186
  %v1001 = vunpack.c.h.b16 %v186
  %v1002 = vunpack.c.l.b16 %v187
  %v1003 = vunpack.c.h.b16 %v187
  %v1004 = vunpack.c.l.b16 %v188
  %v1005 = vunpack.c.h.b16 %v188
  %v1006 = vunpack.c.l.b16 %v189
  %v1007 = vunpack.c.h.b16 %v189
  %v1008 = vunpack.c.l.b16 %v190
  %v1009 = vunpack.c.h.b16 %v190
  %v1010 = vunpack.c.l.b16 %v191
  %v1011 = vunpack.c.h.b16 %v191
  %v1012 = vunpack.c.l.b16 %v192
  %v1013 = vunpack.c.h.b16 %v192
  %v1014 = vunpack.c.l.b16 %v193
  %v1015 = vunpack.c.h.b16 %v193
  %v1016 = vunpack.c.l.b16 %v194
  %v1017 = vunpack.c.h.b16 %v194
  %v1018 = vunpack.c.l.b16 %v195
  %v1019 = vunpack.c.h.b16 %v195
  %v1020 = vunpack.c.l.b16 %v196
  %v1021 = vunpack.c.h.b16 %v196
  %v1022 = vunpack.c.l.b16 %v197
  %v1023 = vunpack.c.h.b16 %v197
  %v1024 = vunpack.c.l.b16 %v198
  %v1025 = vunpack.c.h.b16 %v198
  %v1026 = vunpack.c.l.b16 %v199
  %v1027 = vunpack.c.h.b16 %v199
  %v1028 = vunpack.c.l.b16 %v200
  %v1029 = vunpack.c.h.b16 %v200
  %v1030 = vunpack.c.l.b16 %v201
  %v1031 = vunpack.c.h.b16 %v201
  %v1032 = vunpack.c.l.b16 %v202
  %v1033 = vunpack.c.h.b16 %v202
  %v1034 = vunpack.c.l.b16 %v203
  %v1035 = vunpack.c.h.b16 %v203
  %v1036 = vunpack.c.l.b16 %v204
  %v1037 = vunpack.c.h.b16 %v204
  %v1038 = vunpack.c.l.b16 %v205
  %v1039 = vunpack.c.h.b16 %v205
  %v1040 = vunpack.c.l.b16 %v206
  %v1041 = vunpack.c.h.b16 %v206
  %v1042 = vunpack.c.l.b16 %v207
  %v1043 = vunpack.c.h.b16 %v207
  %v1044 = vunpack.c.l.b16 %v208
  %v1045 = vunpack.c.h.b16 %v208
  %v1046 = vunpack.c.l.b16 %v209
  %v1047 = vunpack.c.h.b16 %v209
  %v1048 = vunpack.c.l.b16 %v210
  %v1049 = vunpack.c.h.b16 %v210
  %v1050 = vunpack.c.l.b16 %v211
  %v1051 = vunpack.c.h.b16 %v211
  %v1052 = vunpack.c.l.b16 %v212
  %v1053 = vunpack.c.h.b16 %v212
  %v1054 = vunpack.c.l.b16 %v213
  %v1055 = vunpack.c.h.b16 %v213
  %v1056 = vunpack.c.l.b16 %v214
  %v1057 = vunpack.c.h.b16 %v214
  %v1058 = vunpack.c.l.b16 %v215
  %v1059 = vunpack.c.h.b16 %v215
  %v1060 = vunpack.c.l.b16 %v216
  %v1061 = vunpack.c.h.b16 %v216
  %v1062 = vunpack.c.l.b16 %v217
  %v1063 = vunpack.c.h.b16 %v217
  %v1064 = vunpack.c.l.b16 %v218
  %v1065 = vunpack.c.h.b16 %v218
  %v1066 = vunpack.c.l.b16 %v219
  %v1067 = vunpack.c.h.b16 %v219
  %v1068 = vunpack.c.l.b16 %v220
  %v1069 = vunpack.c.h.b16 %v220
  %v1070 = vunpack.c.l.b16 %v221
  %v1071 = vunpack.c.h.b16 %v221
  %v1072 = vunpack.c.l.b16 %v222
  %v1073 = vunpack.c.h.b16 %v222
  %v1074 = vunpack.c.l.b16 %v223
  %v1075 = vunpack.c.h.b16 %v223
  %v1076 = vunpack.c.l.b16 %v224
  %v1077 = vunpack.c.h.b16 %v224
  %v1078 = vunpack.c.l.b16 %v225
  %v1079 = vunpack.c.h.b16 %v225
  %v1080 = vunpack.c.l.b16 %v226
  %v1081 = vunpack.c.h.b16 %v226
  %v1082 = vunpack.c.l.b16 %v227
  %v1083 = vunpack.c.h.b16 %v227
  %v1084 = vunpack.c.l.b16 %v228
  %v1085 = vunpack.c.h.b16 %v228
  %v1086 = vunpack.c.l.b16 %v229
  %v1087 = vunpack.c.h.b16 %v229
  %v1088 = vunpack.c.l.b16 %v230
  %v1089 = vunpack.c.h.b16 %v230
  %v1090 = vunpack.c.l.b16 %v231
  %v1091 = vunpack.c.h.b16 %v231
  %v1092 = vunpack.c.l.b16 %v232
  %v1093 = vunpack.c.h.b16 %v232
  %v1094 = vunpack.c.l.b16 %v233
  %v1095 = vunpack.c.h.b16 %v233
  %v1096 = vunpack.c.l.b16 %v234
  %v1097 = vunpack.c.h.b16 %v234
  %v1098 = vunpack.c.l.b16 %v235
  %v1099 = vunpack.c.h.b16 %v235
  %v1100 = vunpack.c.l.b16 %v236
  %v1101 = vunpack.c.h.b16 %v236
  %v1102 = vunpack.c.l.b16 %v237
  %v1103 = vunpack.c.h.b16 %v237
  %v1104 = vunpack.c.l.b16 %v238
  %v1105 = vunpack.c.h.b16 %v238
  %v1106 = vunpack.c.l.b16 %v239
  %v1107 = vunpack.c.h.b16 %v239
  %v1108 = vunpack.c.l.b16 %v240
  %v1109 = vunpack.c.h.b16 %v240
  %v1110 = vunpack.c.l.b16 %v241
  %v1111 = vunpack.c.h.b16 %v241
  %v1112 = vunpack.c.l.b16 %v242
  %v1113 = vunpack.c.h.b16 %v242
  %v1114 = vunpack.c.l.b16 %v243
  %v1115 = vunpack.c.h.b16 %v243
  %v1116 = vunpack.c.l.b16 %v244
  %v1117 = vunpack.c.h.b16 %v244
  %v1118 = vunpack.c.l.b16 %v245
  %v1119 = vunpack.c.h.b16 %v245
  %v1120 = vunpack.c.l.b16 %v246
  %v1121 = vunpack.c.h.b16 %v246
  %v1122 = vunpack.c.l.b16 %v247
  %v1123 = vunpack.c.h.b16 %v247
  %v1124 = vunpack.c.l.b16 %v248
  %v1125 = vunpack.c.h.b16 %v248
  %v1126 = vunpack.c.l.b16 %v249
  %v1127 = vunpack.c.h.b16 %v249
  %v1128 = vunpack.c.l.b16 %v250
  %v1129 = vunpack.c.h.b16 %v250
  %v1130 = vunpack.c.l.b16 %v251
  %v1131 = vunpack.c.h.b16 %v251
  %v1132 = vunpack.c.l.b16 %v252
  %v1133 = vunpack.c.h.b16 %v252
  %v1134 = vunpack.c.l.b16 %v253
  %v1135 = vunpack.c.h.b16 %v253
  %v1136 = vunpack.c.l.b16 %v254
  %v1137 = vunpack.c.h.b16 %v254
  %v1138 = vunpack.c.l.b16 %v255
  %v1139 = vunpack.c.h.b16 %v255
  %v1140 = vunpack.c.l.b16 %v256
  %v1141 = vunpack.c.h.b16 %v256
  %v1142 = vunpack.c.l.b16 %v257
  %v1143 = vunpack.c.h.b16 %v257
  %v1144 = vunpack.c.l.b16 %v258
  %v1145 = vunpack.c.h.b16 %v258
  %v1146 = vunpack.c.l.b16 %v259
  %v1147 = vunpack.c.h.b16 %v259
  %v1148 = vunpack.c.l.b16 %v260
  %v1149 = vunpack.c.h.b16 %v260
  %v1150 = vunpack.c.l.b16 %v261
  %v1151 = vunpack.c.h.b16 %v261
  %v1152 = vunpack.c.l.b16 %v262
  %v1153 = vunpack.c.h.b16 %v262
  %v1154 = vunpack.c.l.b16 %v263
  %v1155 = vunpack.c.h.b16 %v263
  %v1156 = vunpack.c.l.b16 %v264
  %v1157 = vunpack.c.h.b16 %v264
  %v1158 = vunpack.c.l.b16 %v265
  %v1159 = vunpack.c.h.b16 %v265
  %v1160 = vunpack.c.l.b16 %v266
  %v1161 = vunpack.c.h.b16 %v266
  %v1162 = vunpack.c.l.b16 %v267
  %v1163 = vunpack.c.h.b16 %v267
  %v1164 = vunpack.c.l.b16 %v268
  %v1165 = vunpack.c.h.b16 %v268
  %v1166 = vunpack.c.l.b16 %v269
  %v1167 = vunpack.c.h.b16 %v269
  %v1168 = vunpack.c.l.b16 %v270
  %v1169 = vunpack.c.h.b16 %v270
  %v1170 = vunpack.c.l.b16 %v271
  %v1171 = vunpack.c.h.b16 %v271
  %v1172 = vunpack.c.l.b16 %v272
  %v1173 = vunpack.c.h.b16 %v272
  %v1174 = vunpack.c.l.b16 %v273
  %v1175 = vunpack.c.h.b16 %v273
  %v1176 = vunpack.c.l.b16 %v274
  %v1177 = vunpack.c.h.b16 %v274
  %v1178 = vunpack.c.l.b16 %v275
  %v1179 = vunpack.c.h.b16 %v275
  %v1180 = vunpack.c.l.b16 %v276
  %v1181 = vunpack.c.h.b16 %v276
  %v1182 = vunpack.c.l.b16 %v277
  %v1183 = vunpack.c.h.b16 %v277
  %v1184 = vunpack.c.l.b16 %v278
  %v1185 = vunpack.c.h.b16 %v278
  %v1186 = vunpack.c.l.b16 %v279
  %v1187 = vunpack.c.h.b16 %v279
  %v1188 = vunpack.c.l.b16 %v280
  %v1189 = vunpack.c.h.b16 %v280
  %v1190 = vunpack.c.l.b16 %v281
  %v1191 = vunpack.c.h.b16 %v281
  %v1192 = vunpack.c.l.b16 %v282
  %v1193 = vunpack.c.h.b16 %v282
  %v1194 = vunpack.c.l.b16 %v283
  %v1195 = vunpack.c.h.b16 %v283
  %v1196 = vunpack.c.l.b16 %v284
  %v1197 = vunpack.c.h.b16 %v284
  %v1198 = vunpack.c.l.b16 %v285
  %v1199 = vunpack.c.h.b16 %v285
  %v1200 = vunpack.c.l.b16 %v286
  %v1201 = vunpack.c.h.b16 %v286
  %v1202 = vunpack.c.l.b16 %v287
  %v1203 = vunpack.c.h.b16 %v287
  %v1204 = vunpack.c.l.b16 %v288
  %v1205 = vunpack.c.h.b16 %v288
  %v1206 = vunpack.c.l.b16 %v289
  %v1207 = vunpack.c.h.b16 %v289
  %v1208 = vunpack.c.l.b16 %v290
  %v1209 = vunpack.c.h.b16 %v290
  %v1210 = vunpack.c.l.b16 %v291
  %v1211 = vunpack.c.h.b16 %v291
  %v1212 = vunpack.c.l.b16 %v292
  %v1213 = vunpack.c.h.b16 %v292
  %v1214 = vunpack.c.l.b16 %v293
  %v1215 = vunpack.c.h.b16 %v293
  %v1216 = vunpack.c.l.b16 %v294
  %v1217 = vunpack.c.h.b16 %v294
  %v1218 = vunpack.c.l.b16 %v295
  %v1219 = vunpack.c.h.b16 %v295
  %v1220 = vunpack.c.l.b16 %v296
  %v1221 = vunpack.c.h.b16 %v296
  %v1222 = vunpack.c.l.b16 %v297
  %v1223 = vunpack.c.h.b16 %v297
  %v1224 = vunpack.c.l.b16 %v298
  %v1225 = vunpack.c.h.b16 %v298
  %v1226 = vunpack.c.l.b16 %v299
  %v1227 = vunpack.c.h.b16 %v299
  %v1228 = vunpack.c.l.b16 %v300
  %v1229 = vunpack.c.h.b16 %v300
  %v1230 = vunpack.c.l.b16 %v301
  %v1231 = vunpack.c.h.b16 %v301
  %v1232 = vunpack.c.l.b16 %v302
  %v1233 = vunpack.c.h.b16 %v302
  %v1234 = vunpack.c.l.b16 %v303
  %v1235 = vunpack.c.h.b16 %v303
  %v1236 = vunpack.c.l.b16 %v304
  %v1237 = vunpack.c.h.b16 %v304
  %v1238 = vunpack.c.l.b16 %v305
  %v1239 = vunpack.c.h.b16 %v305
  %v1240 = vunpack.c.l.b16 %v306
  %v1241 = vunpack.c.h.b16 %v306
  %v1242 = vunpack.c.l.b16 %v307
  %v1243 = vunpack.c.h.b16 %v307
  %v1244 = vunpack.c.l.b16 %v308
  %v1245 = vunpack.c.h.b16 %v308
  %v1246 = vunpack.c.l.b16 %v309
  %v1247 = vunpack.c.h.b16 %v309
  %v1248 = vunpack.c.l.b16 %v310
  %v1249 = vunpack.c.h.b16 %v310
  %v1250 = vunpack.c.l.b16 %v311
  %v1251 = vunpack.c.h.b16 %v311
  %v1252 = vunpack.c.l.b16 %v312
  %v1253 = vunpack.c.h.b16 %v312
  %v1254 = vunpack.c.l.b16 %v313
  %v1255 = vunpack.c.h.b16 %v313
  %v1256 = vunpack.c.l.b16 %v314
  %v1257 = vunpack.c.h.b16 %v314
  %v1258 = vunpack.c.l.b16 %v315
  %v1259 = vunpack.c.h.b16 %v315
  %v1260 = vunpack.c.l.b16 %v316
  %v1261 = vunpack.c.h.b16 %v316
  %v1262 = vunpack.c.l.b16 %v317
  %v1263 = vunpack.c.h.b16 %v317
  %v1264 = vunpack.c.l.b16 %v318
  %v1265 = vunpack.c.h.b16 %v318
  %v1266 = vunpack.c.l.b16 %v319
  %v1267 = vunpack.c.h.b16 %v319
  %v1268 = vunpack.c.l.b16 %v320
  %v1269 = vunpack.c.h.b16 %v320
  %v1270 = vunpack.c.l.b16 %v321
  %v1271 = vunpack.c.h.b16 %v321
  %v1272 = vpack.c.b16 %v702, %v696
  %v1273 = vpack.c.b16 %v703, %v697
  %v1274 = vpack.c.b16 %v704, %v698
  %v1275 = vpack.c.b16 %v705, %v699
  %v1276 = vpack.c.b16 %v706, %v700
  %v1277 = vpack.c.b16 %v707, %v701
  %v1278 = vpack.c.b16 %v714, %v708
  %v1279 = vpack.c.b16 %v715, %v709
  %v1280 = vpack.c.b16 %v716, %v710
  %v1281 = vpack.c.b16 %v717, %v711
  %v1282 = vpack.c.b16 %v718, %v712
  %v1283 = vpack.c.b16 %v719, %v713
  %v1284 = vpack.c.b16 %v726, %v720
  %v1285 = vpack.c.b16 %v727, %v721
  %v1286 = vpack.c.b16 %v728, %v722
  %v1287 = vpack.c.b16 %v729, %v723
  %v1288 = vpack.c.b16 %v730, %v724
  %v1289 = vpack.c.b16 %v731, %v725
  %v1290 = vpack.c.b16 %v738, %v732
  %v1291 = vpack.c.b16 %v739, %v733
  %v1292 = vpack.c.b16 %v740, %v734
  %v1293 = vpack.c.b16 %v741, %v735
  %v1294 = vpack.c.b16 %v742, %v736
  %v1295 = vpack.c.b16 %v743, %v737
  %v1296 = vpack.c.b16 %v750, %v744
  %v1297 = vpack.c.b16 %v751, %v745
  %v1298 = vpack.c.b16 %v752, %v746
  %v1299 = vpack.c.b16 %v753, %v747
  %v1300 = vpack.c.b16 %v754, %v748
  %v1301 = vpack.c.b16 %v755, %v749
  %v1302 = vpack.c.b16 %v762, %v756
  %v1303 = vpack.c.b16 %v763, %v757
  %v1304 = vpack.c.b16 %v764, %v758
  %v1305 = vpack.c.b16 %v765, %v759
  %v1306 = vpack.c.b16 %v766, %v760
  %v1307 = vpack.c.b16 %v767, %v761
  %v1308 = vpack.c.b16 %v774, %v768
  %v1309 = vpack.c.b16 %v775, %v769
  %v1310 = vpack.c.b16 %v776, %v770
  %v1311 = vpack.c.b16 %v777, %v771
  %v1312 = vpack.c.b16 %v778, %v772
  %v1313 = vpack.c.b16 %v779, %v773
  %v1314 = vpack.c.b16 %v786, %v780
  %v1315 = vpack.c.b16 %v787, %v781
  %v1316 = vpack.c.b16 %v788, %v782
  %v1317 = vpack.c.b16 %v789, %v783
  %v1318 = vpack.c.b16 %v790, %v784
  %v1319 = vpack.c.b16 %v791, %v785
  %v1320 = vpack.c.b16 %v798, %v792
  %v1321 = vpack.c.b16 %v799, %v793
  %v1322 = vpack.c.b16 %v800, %v794
  %v1323 = vpack.c.b16 %v801, %v795
  %v1324 = vpack.c.b16 %v802, %v796
  %v1325 = vpack.c.b16 %v803, %v797
  %v1326 = vpack.c.b16 %v810, %v804
  %v1327 = vpack.c.b16 %v811, %v805
  %v1328 = vpack.c.b16 %v812, %v806
  %v1329 = vpack.c.b16 %v813, %v807
  %v1330 = vpack.c.b16 %v814, %v808
  %v1331 = vpack.c.b16 %v815, %v809
  %v1332 = vpack.c.b16 %v822, %v816
  %v1333 = vpack.c.b16 %v823, %v817
  %v1334 = vpack.c.b16 %v824, %v818
  %v1335 = vpack.c.b16 %v825, %v819
  %v1336 = vpack.c.b16 %v826, %v820
  %v1337 = vpack.c.b16 %v827, %v821
  %v1338 = vpack.c.b16 %v834, %v828
  %v1339 = vpack.c.b16 %v835, %v829
  %v1340 = vpack.c.b16 %v836, %v830
  %v1341 = vpack.c.b16 %v837, %v831
  %v1342 = vpack.c.b16 %v838, %v832
  %v1343 = vpack.c.b16 %v839, %v833
  %v1344 = vpack.c.b16 %v846, %v840
  %v1345 = vpack.c.b16 %v847, %v841
  %v1346 = vpack.c.b16 %v848, %v842
  %v1347 = vpack.c.b16 %v849, %v843
  %v1348 = vpack.c.b16 %v850, %v844
  %v1349 = vpack.c.b16 %v851, %v845
  %v1350 = vpack.c.b16 %v858, %v852
  %v1351 = vpack.c.b16 %v859, %v853
  %v1352 = vpack.c.b16 %v860, %v854
  %v1353 = vpack.c.b16 %v861, %v855
  %v1354 = vpack.c.b16 %v862, %v856
  %v1355 = vpack.c.b16 %v863, %v857
  %v1356 = vpack.c.b16 %v870, %v864
  %v1357 = vpack.c.b16 %v871, %v865
  %v1358 = vpack.c.b16 %v872, %v866
  %v1359 = vpack.c.b16 %v873, %v867
  %v1360 = vpack.c.b16 %v874, %v868
  %v1361 = vpack.c.b16 %v875, %v869
  %v1362 = vpack.c.b16 %v882, %v876
  %v1363 = vpack.c.b16 %v883, %v877
  %v1364 = vpack.c.b16 %v884, %v878
  %v1365 = vpack.c.b16 %v885, %v879
  %v1366 = vpack.c.b16 %v886, %v880
  %v1367 = vpack.c.b16 %v887, %v881
  %v1368 = vpack.c.b16 %v894, %v888
  %v1369 = vpack.c.b16 %v895, %v889
  %v1370 = vpack.c.b16 %v896, %v890
  %v1371 = vpack.c.b16 %v897, %v891
  %v1372 = vpack.c.b16 %v898, %v892
  %v1373 = vpack.c.b16 %v899, %v893
  %v1374 = vpack.c.b16 %v906, %v900
  %v1375 = vpack.c.b16 %v907, %v901
  %v1376 = vpack.c.b16 %v908, %v902
  %v1377 = vpack.c.b16 %v909, %v903
  %v1378 = vpack.c.b16 %v910, %v904
  %v1379 = vpack.c.b16 %v911, %v905
  %v1380 = vpack.c.b16 %v918, %v912
  %v1381 = vpack.c.b16 %v919, %v913
  %v1382 = vpack.c.b16 %v920, %v914
  %v1383 = vpack.c.b16 %v921, %v915
  %v1384 = vpack.c.b16 %v922, %v916
  %v1385 = vpack.c.b16 %v923, %v917
  %v1386 = vpack.c.b16 %v930, %v924
  %v1387 = vpack.c.b16 %v931, %v925
  %v1388 = vpack.c.b16 %v932, %v926
  %v1389 = vpack.c.b16 %v933, %v927
  %v1390 = vpack.c.b16 %v934, %v928
  %v1391 = vpack.c.b16 %v935, %v929
  %v1392 = vpack.c.b16 %v942, %v936
  %v1393 = vpack.c.b16 %v943, %v937
  %v1394 = vpack.c.b16 %v944, %v938
  %v1395 = vpack.c.b16 %v945, %v939
  %v1396 = vpack.c.b16 %v946, %v940
  %v1397 = vpack.c.b16 %v947, %v941
  %v1398 = vpack.c.b16 %v954, %v948
  %v1399 = vpack.c.b16 %v955, %v949
  %v1400 = vpack.c.b16 %v956, %v950
  %v1401 = vpack.c.b16 %v957, %v951
  %v1402 = vpack.c.b16 %v958, %v952
  %v1403 = vpack.c.b16 %v959, %v953
  %v1404 = vpack.c.b16 %v966, %v960
  %v1405 = vpack.c.b16 %v967, %v961
  %v1406 = vpack.c.b16 %v968, %v962
  %v1407 = vpack.c.b16 %v969, %v963
  %v1408 = vpack.c.b16 %v970, %v964
  %v1409 = vpack.c.b16 %v971, %v965
  %v1410 = vpack.c.b16 %v978, %v972
  %v1411 = vpack.c.b16 %v979, %v973
  %v1412 = vpack.c.b16 %v980, %v974
  %v1413 = vpack.c.b16 %v981, %v975
  %v1414 = vpack.c.b16 %v982, %v976
  %v1415 = vpack.c.b16 %v983, %v977
  %v1416 = vpack.c.b16 %v990, %v984
  %v1417 = vpack.c.b16 %v991, %v985
  %v1418 = vpack.c.b16 %v992, %v986
  %v1419 = vpack.c.b16 %v993, %v987
  %v1420 = vpack.c.b16 %v994, %v988
  %v1421 = vpack.c.b16 %v995, %v989
  %v1422 = vpack.c.b16 %v1002, %v996
  %v1423 = vpack.c.b16 %v1003, %v997
  %v1424 = vpack.c.b16 %v1004, %v998
  %v1425 = vpack.c.b16 %v1005, %v999
  %v1426 = vpack.c.b16 %v1006, %v1000
  %v1427 = vpack.c.b16 %v1007, %v1001
  %v1428 = vpack.c.b16 %v1014, %v1008
  %v1429 = vpack.c.b16 %v1015, %v1009
  %v1430 = vpack.c.b16 %v1016, %v1010
  %v1431 = vpack.c.b16 %v1017, %v1011
  %v1432 = vpack.c.b16 %v1018, %v1012
  %v1433 = vpack.c.b16 %v1019, %v1013
  %v1434 = vpack.c.b16 %v1026, %v1020
  %v1435 = vpack.c.b16 %v1027, %v1021
  %v1436 = vpack.c.b16 %v1028, %v1022
  %v1437 = vpack.c.b16 %v1029, %v1023
  %v1438 = vpack.c.b16 %v1030, %v1024
  %v1439 = vpack.c.b16 %v1031, %v1025
  %v1440 = vpack.c.b16 %v1038, %v1032
  %v1441 = vpack.c.b16 %v1039, %v1033
  %v1442 = vpack.c.b16 %v1040, %v1034
  %v1443 = vpack.c.b16 %v1041, %v1035
  %v1444 = vpack.c.b16 %v1042, %v1036
  %v1445 = vpack.c.b16 %v1043, %v1037
  %v1446 = vpack.c.b16 %v1050, %v1044
  %v1447 = vpack.c.b16 %v1051, %v1045
  %v1448 = vpack.c.b16 %v1052, %v1046
  %v1449 = vpack.c.b16 %v1053, %v1047
  %v1450 = vpack.c.b16 %v1054, %v1048
  %v1451 = vpack.c.b16 %v1055, %v1049
  %v1452 = vpack.c.b16 %v1062, %v1056
  %v1453 = vpack.c.b16 %v1063, %v1057
  %v1454 = vpack.c.b16 %v1064, %v1058
  %v1455 = vpack.c.b16 %v1065, %v1059
  %v1456 = vpack.c.b16 %v1066, %v1060
  %v1457 = vpack.c.b16 %v1067, %v1061
  %v1458 = vpack.c.b16 %v1074, %v1068
  %v1459 = vpack.c.b16 %v1075, %v1069
  %v1460 = vpack.c.b16 %v1076, %v1070
  %v1461 = vpack.c.b16 %v1077, %v1071
  %v1462 = vpack.c.b16 %v1078, %v1072
  %v1463 = vpack.c.b16 %v1079, %v1073
  %v1464 = vpack.c.b16 %v1086, %v1080
  %v1465 = vpack.c.b16 %v1087, %v1081
  %v1466 = vpack.c.b16 %v1088, %v1082
  %v1467 = vpack.c.b16 %v1089, %v1083
  %v1468 = vpack.c.b16 %v1090, %v1084
  %v1469 = vpack.c.b16 %v1091, %v1085
  %v1470 = vpack.c.b16 %v1098, %v1092
  %v1471 = vpack.c.b16 %v1099, %v1093
  %v1472 = vpack.c.b16 %v1100, %v1094
  %v1473 = vpack.c.b16 %v1101, %v1095
  %v1474 = vpack.c.b16 %v1102, %v1096
  %v1475 = vpack.c.b16 %v1103, %v1097
  %v1476 = vpack.c.b16 %v1110, %v1104
  %v1477 = vpack.c.b16 %v1111, %v1105
  %v1478 = vpack.c.b16 %v1112, %v1106
  %v1479 = vpack.c.b16 %v1113, %v1107
  %v1480 = vpack.c.b16 %v1114, %v1108
  %v1481 = vpack.c.b16 %v1115, %v1109
  %v1482 = vpack.c.b16 %v1122, %v1116
  %v1483 = vpack.c.b16 %v1123, %v1117
  %v1484 = vpack.c.b16 %v1124, %v1118
  %v1485 = vpack.c.b16 %v1125, %v1119
  %v1486 = vpack.c.b16 %v1126, %v1120
  %v1487 = vpack.c.b16 %v1127, %v1121
  %v1488 = vpack.c.b16 %v1134, %v1128
  %v1489 = vpack.c.b16 %v1135, %v1129
  %v1490 = vpack.c.b16 %v1136, %v1130
  %v1491 = vpack.c.b16 %v1137, %v1131
  %v1492 = vpack.c.b16 %v1138, %v1132
  %v1493 = vpack.c.b16 %v1139, %v1133
  %v1494 = vpack.c.b16 %v1146, %v1140
  %v1495 = vpack.c.b16 %v1147, %v1141
  %v1496 = vpack.c.b16 %v1148, %v1142
  %v1497 = vpack.c.b16 %v1149, %v1143
  %v1498 = vpack.c.b16 %v1150, %v1144
  %v1499 = vpack.c.b16 %v1151, %v1145
  %v1500 = vpack.c.b16 %v1158, %v1152
  %v1501 = vpack.c.b16 %v1159, %v1153
  %v1502 = vpack.c.b16 %v1160, %v1154
  %v1503 = vpack.c.b16 %v1161, %v1155
  %v1504 = vpack.c.b16 %v1162, %v1156
  %v1505 = vpack.c.b16 %v1163, %v1157
  %v1506 = vpack.c.b16 %v1170, %v1164
  %v1507 = vpack.c.b16 %v1171, %v1165
  %v1508 = vpack.c.b16 %v1172, %v1166
  %v1509 = vpack.c.b16 %v1173, %v1167
  %v1510 = vpack.c.b16 %v1174, %v1168
  %v1511 = vpack.c.b16 %v1175, %v1169
  %v1512 = vpack.c.b16 %v1182, %v1176
  %v1513 = vpack.c.b16 %v1183, %v1177
  %v1514 = vpack.c.b16 %v1184, %v1178
  %v1515 = vpack.c.b16 %v1185, %v1179
  %v1516 = vpack.c.b16 %v1186, %v1180
  %v1517 = vpack.c.b16 %v1187, %v1181
  %v1518 = vpack.c.b16 %v1194, %v1188
  %v1519 = vpack.c.b16 %v1195, %v1189
  %v1520 = vpack.c.b16 %v1196, %v1190
  %v1521 = vpack.c.b16 %v1197, %v1191
  %v1522 = vpack.c.b16 %v1198, %v1192
  %v1523 = vpack.c.b16 %v1199, %v1193
  %v1524 = vpack.c.b16 %v1206, %v1200
  %v1525 = vpack.c.b16 %v1207, %v1201
  %v1526 = vpack.c.b16 %v1208, %v1202
  %v1527 = vpack.c.b16 %v1209, %v1203
  %v1528 = vpack.c.b16 %v1210, %v1204
  %v1529 = vpack.c.b16 %v1211, %v1205
  %v1530 = vpack.c.b16 %v1218, %v1212
  %v1531 = vpack.c.b16 %v1219, %v1213
  %v1532 = vpack.c.b16 %v1220, %v1214
  %v1533 = vpack.c.b16 %v1221, %v1215
  %v1534 = vpack.c.b16 %v1222, %v1216
  %v1535 = vpack.c.b16 %v1223, %v1217
  %v1536 = vpack.c.b16 %v1230, %v1224
  %v1537 = vpack.c.b16 %v1231, %v1225
  %v1538 = vpack.c.b16 %v1232, %v1226
  %v1539 = vpack.c.b16 %v1233, %v1227
  %v1540 = vpack.c.b16 %v1234, %v1228
  %v1541 = vpack.c.b16 %v1235, %v1229
  %v1542 = vpack.c.b16 %v1242, %v1236
  %v1543 = vpack.c.b16 %v1243, %v1237
  %v1544 = vpack.c.b16 %v1244, %v1238
  %v1545 = vpack.c.b16 %v1245, %v1239
  %v1546 = vpack.c.b16 %v1246, %v1240
  %v1547 = vpack.c.b16 %v1247, %v1241
  %v1548 = vpack.c.b16 %v1254, %v1248
  %v1549 = vpack.c.b16 %v1255, %v1249
  %v1550 = vpack.c.b16 %v1256, %v1250
  %v1551 = vpack.c.b16 %v1257, %v1251
  %v1552 = vpack.c.b16 %v1258, %v1252
  %v1553 = vpack.c.b16 %v1259, %v1253
  %v1554 = vpack.c.b16 %v1266, %v1260
  %v1555 = vpack.c.b16 %v1267, %v1261
  %v1556 = vpack.c.b16 %v1268, %v1262
  %v1557 = vpack.c.b16 %v1269, %v1263
  %v1558 = vpack.c.b16 %v1270, %v1264
  %v1559 = vpack.c.b16 %v1271, %v1265
  %1848 = vmatprep.subr.bf16.mxu0 %v1273
  %1849 = vmatpush1.bf16.msra.mxu0 %v1272
  %1850 = vmatprep.subr.bf16.mxu0 %v1279
  %1851 = vmatpush1.bf16.msra.mxu0 %v1278
  %1852 = vmatprep.subr.bf16.mxu0 %v1285
  %1853 = vmatpush1.bf16.msra.mxu0 %v1284
  %1854 = vmatprep.subr.bf16.mxu0 %v1291
  %1855 = vmatpush1.bf16.msra.mxu0 %v1290
  %1856 = vmatprep.subr.bf16.mxu0 %v1297
  %1857 = vmatpush1.bf16.msra.mxu0 %v1296
  %1858 = vmatprep.subr.bf16.mxu0 %v1303
  %1859 = vmatpush1.bf16.msra.mxu0 %v1302
  %1860 = vmatprep.subr.bf16.mxu0 %v1309
  %1861 = vmatpush1.bf16.msra.mxu0 %v1308
  %1862 = vmatprep.subr.bf16.mxu0 %v1315
  %1863 = vmatpush1.bf16.msra.mxu0 %v1314
  %1864 = vmatprep.subr.bf16.mxu0 %v1321
  %1865 = vmatpush1.bf16.msra.mxu0 %v1320
  %1866 = vmatprep.subr.bf16.mxu0 %v1327
  %1867 = vmatpush1.bf16.msra.mxu0 %v1326
  %1868 = vmatprep.subr.bf16.mxu0 %v1333
  %1869 = vmatpush1.bf16.msra.mxu0 %v1332
  %1870 = vmatprep.subr.bf16.mxu0 %v1339
  %1871 = vmatpush1.bf16.msra.mxu0 %v1338
  %1872 = vmatprep.subr.bf16.mxu0 %v1345
  %1873 = vmatpush1.bf16.msra.mxu0 %v1344
  %1874 = vmatprep.subr.bf16.mxu0 %v1351
  %1875 = vmatpush1.bf16.msra.mxu0 %v1350
  %1876 = vmatprep.subr.bf16.mxu0 %v1357
  %1877 = vmatpush1.bf16.msra.mxu0 %v1356
  %1878 = vmatprep.subr.bf16.mxu0 %v1363
  %1879 = vmatpush1.bf16.msra.mxu0 %v1362
  %1880 = vmatprep.mubr.bf16.mxu0 %v392
  %1881 = vmatmul.mubr.bf16.gmra.mrb[0].mxu0 %v378
  %v1882 = vpop.f32.mrb[0].mxu0
  %v1883 = vadd.f32 %v327, %v1882
  %v1884 = vpop.f32.mrb[0].mxu0
  %v1885 = vadd.f32 %v331, %v1884
  %v1886 = vpop.f32.mrb[0].mxu0
  %v1887 = vpop.f32.mrb[0].mxu0
  %1888 = vdwg.mxu0
  %1889 = vmatprep.subr.bf16.mxu0 %v1369
  %1890 = vmatpush1.bf16.msra.mxu0 %v1368
  %1891 = vmatprep.subr.bf16.mxu0 %v1375
  %1892 = vmatpush1.bf16.msra.mxu0 %v1374
  %1893 = vmatprep.subr.bf16.mxu0 %v1381
  %1894 = vmatpush1.bf16.msra.mxu0 %v1380
  %1895 = vmatprep.subr.bf16.mxu0 %v1387
  %1896 = vmatpush1.bf16.msra.mxu0 %v1386
  %1897 = vmatprep.subr.bf16.mxu0 %v1393
  %1898 = vmatpush1.bf16.msra.mxu0 %v1392
  %1899 = vmatprep.subr.bf16.mxu0 %v1399
  %1900 = vmatpush1.bf16.msra.mxu0 %v1398
  %1901 = vmatprep.subr.bf16.mxu0 %v1405
  %1902 = vmatpush1.bf16.msra.mxu0 %v1404
  %1903 = vmatprep.subr.bf16.mxu0 %v1411
  %1904 = vmatpush1.bf16.msra.mxu0 %v1410
  %1905 = vmatprep.subr.bf16.mxu0 %v1417
  %1906 = vmatpush1.bf16.msra.mxu0 %v1416
  %1907 = vmatprep.subr.bf16.mxu0 %v1423
  %1908 = vmatpush1.bf16.msra.mxu0 %v1422
  %1909 = vmatprep.subr.bf16.mxu0 %v1429
  %1910 = vmatpush1.bf16.msra.mxu0 %v1428
  %1911 = vmatprep.subr.bf16.mxu0 %v1435
  %1912 = vmatpush1.bf16.msra.mxu0 %v1434
  %1913 = vmatprep.subr.bf16.mxu0 %v1441
  %1914 = vmatpush1.bf16.msra.mxu0 %v1440
  %1915 = vmatprep.subr.bf16.mxu0 %v1447
  %1916 = vmatpush1.bf16.msra.mxu0 %v1446
  %1917 = vmatprep.subr.bf16.mxu0 %v1453
  %1918 = vmatpush1.bf16.msra.mxu0 %v1452
  %1919 = vmatprep.subr.bf16.mxu0 %v1459
  %1920 = vmatpush1.bf16.msra.mxu0 %v1458
  %1921 = vmatprep.mubr.bf16.mxu0 %v401
  %1922 = vmatmul.mubr.bf16.gmra.mrb[0].mxu0 %v400
  %v1923 = vpop.f32.mrb[0].mxu0
  %v1924 = vadd.f32 %v1883, %v1923
  %v1925 = vpop.f32.mrb[0].mxu0
  %v1926 = vadd.f32 %v1885, %v1925
  %v1927 = vpop.f32.mrb[0].mxu0
  %v1928 = vpop.f32.mrb[0].mxu0
  %1929 = vdwg.mxu0
  %1930 = vmatprep.subr.bf16.mxu0 %v1465
  %1931 = vmatpush1.bf16.msra.mxu0 %v1464
  %1932 = vmatprep.subr.bf16.mxu0 %v1471
  %1933 = vmatpush1.bf16.msra.mxu0 %v1470
  %1934 = vmatprep.subr.bf16.mxu0 %v1477
  %1935 = vmatpush1.bf16.msra.mxu0 %v1476
  %1936 = vmatprep.subr.bf16.mxu0 %v1483
  %1937 = vmatpush1.bf16.msra.mxu0 %v1482
  %1938 = vmatprep.subr.bf16.mxu0 %v1489
  %1939 = vmatpush1.bf16.msra.mxu0 %v1488
  %1940 = vmatprep.subr.bf16.mxu0 %v1495
  %1941 = vmatpush1.bf16.msra.mxu0 %v1494
  %1942 = vmatprep.subr.bf16.mxu0 %v1501
  %1943 = vmatpush1.bf16.msra.mxu0 %v1500
  %1944 = vmatprep.subr.bf16.mxu0 %v1507
  %1945 = vmatpush1.bf16.msra.mxu0 %v1506
  %1946 = vmatprep.subr.bf16.mxu0 %v1513
  %1947 = vmatpush1.bf16.msra.mxu0 %v1512
  %1948 = vmatprep.subr.bf16.mxu0 %v1519
  %1949 = vmatpush1.bf16.msra.mxu0 %v1518
  %1950 = vmatprep.subr.bf16.mxu0 %v1525
  %1951 = vmatpush1.bf16.msra.mxu0 %v1524
  %1952 = vmatprep.subr.bf16.mxu0 %v1531
  %1953 = vmatpush1.bf16.msra.mxu0 %v1530
  %1954 = vmatprep.subr.bf16.mxu0 %v1537
  %1955 = vmatpush1.bf16.msra.mxu0 %v1536
  %1956 = vmatprep.subr.bf16.mxu0 %v1543
  %1957 = vmatpush1.bf16.msra.mxu0 %v1542
  %1958 = vmatprep.subr.bf16.mxu0 %v1549
  %1959 = vmatpush1.bf16.msra.mxu0 %v1548
  %1960 = vmatprep.subr.bf16.mxu0 %v1555
  %1961 = vmatpush1.bf16.msra.mxu0 %v1554
  %1962 = vmatprep.mubr.bf16.mxu0 %v399
  %1963 = vmatmul.mubr.bf16.gmra.mrb[0].mxu0 %v385
  %v1964 = vpop.f32.mrb[0].mxu0
  %v1965 = vadd.f32 %v1924, %v1964
  %v1966 = vpop.f32.mrb[0].mxu0
  %v1967 = vadd.f32 %v1926, %v1966
  %v1968 = vpop.f32.mrb[0].mxu0
  %v1969 = vpop.f32.mrb[0].mxu0
  %1970 = vdwg.mxu0
  %1971 = vmatprep.subr.bf16.mxu0 %v1275
  %1972 = vmatpush1.bf16.msra.mxu0 %v1274
  %1973 = vmatprep.subr.bf16.mxu0 %v1281
  %1974 = vmatpush1.bf16.msra.mxu0 %v1280
  %1975 = vmatprep.subr.bf16.mxu0 %v1287
  %1976 = vmatpush1.bf16.msra.mxu0 %v1286
  %1977 = vmatprep.subr.bf16.mxu0 %v1293
  %1978 = vmatpush1.bf16.msra.mxu0 %v1292
  %1979 = vmatprep.subr.bf16.mxu0 %v1299
  %1980 = vmatpush1.bf16.msra.mxu0 %v1298
  %1981 = vmatprep.subr.bf16.mxu0 %v1305
  %1982 = vmatpush1.bf16.msra.mxu0 %v1304
  %1983 = vmatprep.subr.bf16.mxu0 %v1311
  %1984 = vmatpush1.bf16.msra.mxu0 %v1310
  %1985 = vmatprep.subr.bf16.mxu0 %v1317
  %1986 = vmatpush1.bf16.msra.mxu0 %v1316
  %1987 = vmatprep.subr.bf16.mxu0 %v1323
  %1988 = vmatpush1.bf16.msra.mxu0 %v1322
  %1989 = vmatprep.subr.bf16.mxu0 %v1329
  %1990 = vmatpush1.bf16.msra.mxu0 %v1328
  %1991 = vmatprep.subr.bf16.mxu0 %v1335
  %1992 = vmatpush1.bf16.msra.mxu0 %v1334
  %1993 = vmatprep.subr.bf16.mxu0 %v1341
  %1994 = vmatpush1.bf16.msra.mxu0 %v1340
  %1995 = vmatprep.subr.bf16.mxu0 %v1347
  %1996 = vmatpush1.bf16.msra.mxu0 %v1346
  %1997 = vmatprep.subr.bf16.mxu0 %v1353
  %1998 = vmatpush1.bf16.msra.mxu0 %v1352
  %1999 = vmatprep.subr.bf16.mxu0 %v1359
  %2000 = vmatpush1.bf16.msra.mxu0 %v1358
  %2001 = vmatprep.subr.bf16.mxu0 %v1365
  %2002 = vmatpush1.bf16.msra.mxu0 %v1364
  %2003 = vmatprep.mubr.bf16.mxu0 %v392
  %2004 = vmatmul.mubr.bf16.gmra.mrb[0].mxu0 %v378
  %v2005 = vpop.f32.mrb[0].mxu0
  %v2006 = vadd.f32 %v335, %v2005
  %v2007 = vpop.f32.mrb[0].mxu0
  %v2008 = vadd.f32 %v339, %v2007
  %v2009 = vpop.f32.mrb[0].mxu0
  %v2010 = vpop.f32.mrb[0].mxu0
  %2011 = vdwg.mxu0
  %2012 = vmatprep.subr.bf16.mxu0 %v1371
  %2013 = vmatpush1.bf16.msra.mxu0 %v1370
  %2014 = vmatprep.subr.bf16.mxu0 %v1377
  %2015 = vmatpush1.bf16.msra.mxu0 %v1376
  %2016 = vmatprep.subr.bf16.mxu0 %v1383
  %2017 = vmatpush1.bf16.msra.mxu0 %v1382
  %2018 = vmatprep.subr.bf16.mxu0 %v1389
  %2019 = vmatpush1.bf16.msra.mxu0 %v1388
  %2020 = vmatprep.subr.bf16.mxu0 %v1395
  %2021 = vmatpush1.bf16.msra.mxu0 %v1394
  %2022 = vmatprep.subr.bf16.mxu0 %v1401
  %2023 = vmatpush1.bf16.msra.mxu0 %v1400
  %2024 = vmatprep.subr.bf16.mxu0 %v1407
  %2025 = vmatpush1.bf16.msra.mxu0 %v1406
  %2026 = vmatprep.subr.bf16.mxu0 %v1413
  %2027 = vmatpush1.bf16.msra.mxu0 %v1412
  %2028 = vmatprep.subr.bf16.mxu0 %v1419
  %2029 = vmatpush1.bf16.msra.mxu0 %v1418
  %2030 = vmatprep.subr.bf16.mxu0 %v1425
  %2031 = vmatpush1.bf16.msra.mxu0 %v1424
  %2032 = vmatprep.subr.bf16.mxu0 %v1431
  %2033 = vmatpush1.bf16.msra.mxu0 %v1430
  %2034 = vmatprep.subr.bf16.mxu0 %v1437
  %2035 = vmatpush1.bf16.msra.mxu0 %v1436
  %2036 = vmatprep.subr.bf16.mxu0 %v1443
  %2037 = vmatpush1.bf16.msra.mxu0 %v1442
  %2038 = vmatprep.subr.bf16.mxu0 %v1449
  %2039 = vmatpush1.bf16.msra.mxu0 %v1448
  %2040 = vmatprep.subr.bf16.mxu0 %v1455
  %2041 = vmatpush1.bf16.msra.mxu0 %v1454
  %2042 = vmatprep.subr.bf16.mxu0 %v1461
  %2043 = vmatpush1.bf16.msra.mxu0 %v1460
  %2044 = vmatprep.mubr.bf16.mxu0 %v401
  %2045 = vmatmul.mubr.bf16.gmra.mrb[0].mxu0 %v400
  %v2046 = vpop.f32.mrb[0].mxu0
  %v2047 = vadd.f32 %v2006, %v2046
  %v2048 = vpop.f32.mrb[0].mxu0
  %v2049 = vadd.f32 %v2008, %v2048
  %v2050 = vpop.f32.mrb[0].mxu0
  %v2051 = vpop.f32.mrb[0].mxu0
  %2052 = vdwg.mxu0
  %2053 = vmatprep.subr.bf16.mxu0 %v1467
  %2054 = vmatpush1.bf16.msra.mxu0 %v1466
  %2055 = vmatprep.subr.bf16.mxu0 %v1473
  %2056 = vmatpush1.bf16.msra.mxu0 %v1472
  %2057 = vmatprep.subr.bf16.mxu0 %v1479
  %2058 = vmatpush1.bf16.msra.mxu0 %v1478
  %2059 = vmatprep.subr.bf16.mxu0 %v1485
  %2060 = vmatpush1.bf16.msra.mxu0 %v1484
  %2061 = vmatprep.subr.bf16.mxu0 %v1491
  %2062 = vmatpush1.bf16.msra.mxu0 %v1490
  %2063 = vmatprep.subr.bf16.mxu0 %v1497
  %2064 = vmatpush1.bf16.msra.mxu0 %v1496
  %2065 = vmatprep.subr.bf16.mxu0 %v1503
  %2066 = vmatpush1.bf16.msra.mxu0 %v1502
  %2067 = vmatprep.subr.bf16.mxu0 %v1509
  %2068 = vmatpush1.bf16.msra.mxu0 %v1508
  %2069 = vmatprep.subr.bf16.mxu0 %v1515
  %2070 = vmatpush1.bf16.msra.mxu0 %v1514
  %2071 = vmatprep.subr.bf16.mxu0 %v1521
  %2072 = vmatpush1.bf16.msra.mxu0 %v1520
  %2073 = vmatprep.subr.bf16.mxu0 %v1527
  %2074 = vmatpush1.bf16.msra.mxu0 %v1526
  %2075 = vmatprep.subr.bf16.mxu0 %v1533
  %2076 = vmatpush1.bf16.msra.mxu0 %v1532
  %2077 = vmatprep.subr.bf16.mxu0 %v1539
  %2078 = vmatpush1.bf16.msra.mxu0 %v1538
  %2079 = vmatprep.subr.bf16.mxu0 %v1545
  %2080 = vmatpush1.bf16.msra.mxu0 %v1544
  %2081 = vmatprep.subr.bf16.mxu0 %v1551
  %2082 = vmatpush1.bf16.msra.mxu0 %v1550
  %2083 = vmatprep.subr.bf16.mxu0 %v1557
  %2084 = vmatpush1.bf16.msra.mxu0 %v1556
  %2085 = vmatprep.mubr.bf16.mxu0 %v399
  %2086 = vmatmul.mubr.bf16.gmra.mrb[0].mxu0 %v385
  %v2087 = vpop.f32.mrb[0].mxu0
  %v2088 = vadd.f32 %v2047, %v2087
  %v2089 = vpop.f32.mrb[0].mxu0
  %v2090 = vadd.f32 %v2049, %v2089
  %v2091 = vpop.f32.mrb[0].mxu0
  %v2092 = vpop.f32.mrb[0].mxu0
  %2093 = vdwg.mxu0
  %2094 = vmatprep.subr.bf16.mxu0 %v1277
  %2095 = vmatpush1.bf16.msra.mxu0 %v1276
  %2096 = vmatprep.subr.bf16.mxu0 %v1283
  %2097 = vmatpush1.bf16.msra.mxu0 %v1282
  %2098 = vmatprep.subr.bf16.mxu0 %v1289
  %2099 = vmatpush1.bf16.msra.mxu0 %v1288
  %2100 = vmatprep.subr.bf16.mxu0 %v1295
  %2101 = vmatpush1.bf16.msra.mxu0 %v1294
  %2102 = vmatprep.subr.bf16.mxu0 %v1301
  %2103 = vmatpush1.bf16.msra.mxu0 %v1300
  %2104 = vmatprep.subr.bf16.mxu0 %v1307
  %2105 = vmatpush1.bf16.msra.mxu0 %v1306
  %2106 = vmatprep.subr.bf16.mxu0 %v1313
  %2107 = vmatpush1.bf16.msra.mxu0 %v1312
  %2108 = vmatprep.subr.bf16.mxu0 %v1319
  %2109 = vmatpush1.bf16.msra.mxu0 %v1318
  %2110 = vmatprep.subr.bf16.mxu0 %v1325
  %2111 = vmatpush1.bf16.msra.mxu0 %v1324
  %2112 = vmatprep.subr.bf16.mxu0 %v1331
  %2113 = vmatpush1.bf16.msra.mxu0 %v1330
  %2114 = vmatprep.subr.bf16.mxu0 %v1337
  %2115 = vmatpush1.bf16.msra.mxu0 %v1336
  %2116 = vmatprep.subr.bf16.mxu0 %v1343
  %2117 = vmatpush1.bf16.msra.mxu0 %v1342
  %2118 = vmatprep.subr.bf16.mxu0 %v1349
  %2119 = vmatpush1.bf16.msra.mxu0 %v1348
  %2120 = vmatprep.subr.bf16.mxu0 %v1355
  %2121 = vmatpush1.bf16.msra.mxu0 %v1354
  %2122 = vmatprep.subr.bf16.mxu0 %v1361
  %2123 = vmatpush1.bf16.msra.mxu0 %v1360
  %2124 = vmatprep.subr.bf16.mxu0 %v1367
  %2125 = vmatpush1.bf16.msra.mxu0 %v1366
  %2126 = vmatprep.mubr.bf16.mxu0 %v392
  %2127 = vmatmul.mubr.bf16.gmra.mrb[0].mxu0 %v378
  %v2128 = vpop.f32.mrb[0].mxu0
  %v2129 = vadd.f32 %v343, %v2128
  %v2130 = vpop.f32.mrb[0].mxu0
  %v2131 = vadd.f32 %v347, %v2130
  %v2132 = vpop.f32.mrb[0].mxu0
  %v2133 = vpop.f32.mrb[0].mxu0
  %2134 = vdwg.mxu0
  %2135 = vmatprep.subr.bf16.mxu0 %v1373
  %2136 = vmatpush1.bf16.msra.mxu0 %v1372
  %2137 = vmatprep.subr.bf16.mxu0 %v1379
  %2138 = vmatpush1.bf16.msra.mxu0 %v1378
  %2139 = vmatprep.subr.bf16.mxu0 %v1385
  %2140 = vmatpush1.bf16.msra.mxu0 %v1384
  %2141 = vmatprep.subr.bf16.mxu0 %v1391
  %2142 = vmatpush1.bf16.msra.mxu0 %v1390
  %2143 = vmatprep.subr.bf16.mxu0 %v1397
  %2144 = vmatpush1.bf16.msra.mxu0 %v1396
  %2145 = vmatprep.subr.bf16.mxu0 %v1403
  %2146 = vmatpush1.bf16.msra.mxu0 %v1402
  %2147 = vmatprep.subr.bf16.mxu0 %v1409
  %2148 = vmatpush1.bf16.msra.mxu0 %v1408
  %2149 = vmatprep.subr.bf16.mxu0 %v1415
  %2150 = vmatpush1.bf16.msra.mxu0 %v1414
  %2151 = vmatprep.subr.bf16.mxu0 %v1421
  %2152 = vmatpush1.bf16.msra.mxu0 %v1420
  %2153 = vmatprep.subr.bf16.mxu0 %v1427
  %2154 = vmatpush1.bf16.msra.mxu0 %v1426
  %2155 = vmatprep.subr.bf16.mxu0 %v1433
  %2156 = vmatpush1.bf16.msra.mxu0 %v1432
  %2157 = vmatprep.subr.bf16.mxu0 %v1439
  %2158 = vmatpush1.bf16.msra.mxu0 %v1438
  %2159 = vmatprep.subr.bf16.mxu0 %v1445
  %2160 = vmatpush1.bf16.msra.mxu0 %v1444
  %2161 = vmatprep.subr.bf16.mxu0 %v1451
  %2162 = vmatpush1.bf16.msra.mxu0 %v1450
  %2163 = vmatprep.subr.bf16.mxu0 %v1457
  %2164 = vmatpush1.bf16.msra.mxu0 %v1456
  %2165 = vmatprep.subr.bf16.mxu0 %v1463
  %2166 = vmatpush1.bf16.msra.mxu0 %v1462
  %2167 = vmatprep.mubr.bf16.mxu0 %v401
  %2168 = vmatmul.mubr.bf16.gmra.mrb[0].mxu0 %v400
  %v2169 = vpop.f32.mrb[0].mxu0
  %v2170 = vadd.f32 %v2129, %v2169
  %v2171 = vpop.f32.mrb[0].mxu0
  %v2172 = vadd.f32 %v2131, %v2171
  %v2173 = vpop.f32.mrb[0].mxu0
  %v2174 = vpop.f32.mrb[0].mxu0
  %2175 = vdwg.mxu0
  %2176 = vmatprep.subr.bf16.mxu0 %v1469
  %2177 = vmatpush1.bf16.msra.mxu0 %v1468
  %2178 = vmatprep.subr.bf16.mxu0 %v1475
  %2179 = vmatpush1.bf16.msra.mxu0 %v1474
  %2180 = vmatprep.subr.bf16.mxu0 %v1481
  %2181 = vmatpush1.bf16.msra.mxu0 %v1480
  %2182 = vmatprep.subr.bf16.mxu0 %v1487
  %2183 = vmatpush1.bf16.msra.mxu0 %v1486
  %2184 = vmatprep.subr.bf16.mxu0 %v1493
  %2185 = vmatpush1.bf16.msra.mxu0 %v1492
  %2186 = vmatprep.subr.bf16.mxu0 %v1499
  %2187 = vmatpush1.bf16.msra.mxu0 %v1498
  %2188 = vmatprep.subr.bf16.mxu0 %v1505
  %2189 = vmatpush1.bf16.msra.mxu0 %v1504
  %2190 = vmatprep.subr.bf16.mxu0 %v1511
  %2191 = vmatpush1.bf16.msra.mxu0 %v1510
  %2192 = vmatprep.subr.bf16.mxu0 %v1517
  %2193 = vmatpush1.bf16.msra.mxu0 %v1516
  %2194 = vmatprep.subr.bf16.mxu0 %v1523
  %2195 = vmatpush1.bf16.msra.mxu0 %v1522
  %2196 = vmatprep.subr.bf16.mxu0 %v1529
  %2197 = vmatpush1.bf16.msra.mxu0 %v1528
  %2198 = vmatprep.subr.bf16.mxu0 %v1535
  %2199 = vmatpush1.bf16.msra.mxu0 %v1534
  %2200 = vmatprep.subr.bf16.mxu0 %v1541
  %2201 = vmatpush1.bf16.msra.mxu0 %v1540
  %2202 = vmatprep.subr.bf16.mxu0 %v1547
  %2203 = vmatpush1.bf16.msra.mxu0 %v1546
  %2204 = vmatprep.subr.bf16.mxu0 %v1553
  %2205 = vmatpush1.bf16.msra.mxu0 %v1552
  %2206 = vmatprep.subr.bf16.mxu0 %v1559
  %2207 = vmatpush1.bf16.msra.mxu0 %v1558
  %2208 = vmatprep.mubr.bf16.mxu0 %v399
  %2209 = vmatmul.mubr.bf16.gmra.mrb[0].mxu0 %v385
  %v2210 = vpop.f32.mrb[0].mxu0
  %v2211 = vadd.f32 %v2170, %v2210
  %v2212 = vpop.f32.mrb[0].mxu0
  %v2213 = vadd.f32 %v2172, %v2212
  %v2214 = vpop.f32.mrb[0].mxu0
  %v2215 = vpop.f32.mrb[0].mxu0
  %2216 = vdwg.mxu0
  %v2217 = vpack.c.bf16 %v1965, %v1965
  %v2218 = vpack.c.bf16 %v1967, %v1967
  %v2219 = vpack.c.bf16 %v2088, %v2088
  %v2220 = vpack.c.bf16 %v2090, %v2090
  %v2221 = vpack.c.bf16 %v2211, %v2211
  %v2222 = vpack.c.bf16 %v2213, %v2213
  %v2223 = vtanh.bf16.pop %v2217
  %v2224 = vtanh.bf16.pop %v2218
  %v2225 = vtanh.bf16.pop %v2219
  %v2226 = vtanh.bf16.pop %v2220
  %v2227 = vtanh.bf16.pop %v2221
  %v2228 = vtanh.bf16.pop %v2222
  %v2229 = vld [vmem:[%s3] sm:$0xf]
  %v2230 = vld [vmem:[%s3 + $0x4] sm:$0xf]
  %v2231 = vld [vmem:[%s3 + $0x8] sm:$0xf]
  %v2232 = vld [vmem:[%s3 + $0xc] sm:$0xf]
  %v2233 = vld [vmem:[%s3 + $0x10] sm:$0xf]
  %v2234 = vld [vmem:[%s3 + $0x14] sm:$0xf]
  %v2235 = vld [vmem:[%s3 + $0x18] sm:$0xf]
  %v2236 = vld [vmem:[%s3 + $0x1c] sm:$0xf]
  %v2237 = vld [vmem:[%s3 + $0x20] sm:$0xf]
  %v2238 = vld [vmem:[%s3 + $0x24] sm:$0xf]
  %v2239 = vld [vmem:[%s3 + $0x28] sm:$0xf]
  %v2240 = vld [vmem:[%s3 + $0x2c] sm:$0xf]
  %v2241 = vld [vmem:[%s3 + $0x30] sm:$0xf]
  %v2242 = vld [vmem:[%s3 + $0x34] sm:$0xf]
  %v2243 = vld [vmem:[%s3 + $0x38] sm:$0xf]
  %v2244 = vld [vmem:[%s3 + $0x3c] sm:$0xf]
  %v2245 = vld [vmem:[%s3 + $0x40] sm:$0xf]
  %v2246 = vld [vmem:[%s3 + $0x44] sm:$0xf]
  %v2247 = vld [vmem:[%s3 + $0x48] sm:$0xf]
  %v2248 = vld [vmem:[%s3 + $0x4c] sm:$0xf]
  %v2249 = vld [vmem:[%s3 + $0x50] sm:$0xf]
  %v2250 = vld [vmem:[%s3 + $0x54] sm:$0xf]
  %v2251 = vld [vmem:[%s3 + $0x58] sm:$0xf]
  %v2252 = vld [vmem:[%s3 + $0x5c] sm:$0xf]
  %v2253 = vld [vmem:[%s3 + $0x60] sm:$0xf]
  %v2254 = vld [vmem:[%s3 + $0x64] sm:$0xf]
  %v2255 = vld [vmem:[%s3 + $0x68] sm:$0xf]
  %v2256 = vld [vmem:[%s3 + $0x6c] sm:$0xf]
  %v2257 = vld [vmem:[%s3 + $0x70] sm:$0xf]
  %v2258 = vld [vmem:[%s3 + $0x74] sm:$0xf]
  %v2259 = vld [vmem:[%s3 + $0x78] sm:$0xf]
  %v2260 = vld [vmem:[%s3 + $0x7c] sm:$0xf]
  %v2261 = vld [vmem:[%s3 + $0x80] sm:$0xf]
  %v2262 = vld [vmem:[%s3 + $0x84] sm:$0xf]
  %v2263 = vld [vmem:[%s3 + $0x88] sm:$0xf]
  %v2264 = vld [vmem:[%s3 + $0x8c] sm:$0xf]
  %v2265 = vld [vmem:[%s3 + $0x90] sm:$0xf]
  %v2266 = vld [vmem:[%s3 + $0x94] sm:$0xf]
  %v2267 = vld [vmem:[%s3 + $0x98] sm:$0xf]
  %v2268 = vld [vmem:[%s3 + $0x9c] sm:$0xf]
  %v2269 = vld [vmem:[%s3 + $0xa0] sm:$0xf]
  %v2270 = vld [vmem:[%s3 + $0xa4] sm:$0xf]
  %v2271 = vld [vmem:[%s3 + $0xa8] sm:$0xf]
  %v2272 = vld [vmem:[%s3 + $0xac] sm:$0xf]
  %v2273 = vld [vmem:[%s3 + $0xb0] sm:$0xf]
  %v2274 = vld [vmem:[%s3 + $0xb4] sm:$0xf]
  %v2275 = vld [vmem:[%s3 + $0xb8] sm:$0xf]
  %v2276 = vld [vmem:[%s3 + $0xbc] sm:$0xf]
  %v2277 = vld [vmem:[%s3 + $0xc0] sm:$0xf]
  %v2278 = vld [vmem:[%s3 + $0xc4] sm:$0xf]
  %v2279 = vld [vmem:[%s3 + $0xc8] sm:$0xf]
  %v2280 = vld [vmem:[%s3 + $0xcc] sm:$0xf]
  %v2281 = vld [vmem:[%s3 + $0xd0] sm:$0xf]
  %v2282 = vld [vmem:[%s3 + $0xd4] sm:$0xf]
  %v2283 = vld [vmem:[%s3 + $0xd8] sm:$0xf]
  %v2284 = vld [vmem:[%s3 + $0xdc] sm:$0xf]
  %v2285 = vld [vmem:[%s3 + $0xe0] sm:$0xf]
  %v2286 = vld [vmem:[%s3 + $0xe4] sm:$0xf]
  %v2287 = vld [vmem:[%s3 + $0xe8] sm:$0xf]
  %v2288 = vld [vmem:[%s3 + $0xec] sm:$0xf]
  %v2289 = vld [vmem:[%s3 + $0xf0] sm:$0xf]
  %v2290 = vld [vmem:[%s3 + $0xf4] sm:$0xf]
  %v2291 = vld [vmem:[%s3 + $0xf8] sm:$0xf]
  %v2292 = vld [vmem:[%s3 + $0xfc] sm:$0xf]
  %v2293 = vld [vmem:[%s3 + $0x100] sm:$0xf]
  %v2294 = vld [vmem:[%s3 + $0x104] sm:$0xf]
  %v2295 = vld [vmem:[%s3 + $0x108] sm:$0xf]
  %v2296 = vld [vmem:[%s3 + $0x10c] sm:$0xf]
  %v2297 = vld [vmem:[%s3 + $0x110] sm:$0xf]
  %v2298 = vld [vmem:[%s3 + $0x114] sm:$0xf]
  %v2299 = vld [vmem:[%s3 + $0x118] sm:$0xf]
  %v2300 = vld [vmem:[%s3 + $0x11c] sm:$0xf]
  %v2301 = vld [vmem:[%s3 + $0x120] sm:$0xf]
  %v2302 = vld [vmem:[%s3 + $0x124] sm:$0xf]
  %v2303 = vld [vmem:[%s3 + $0x128] sm:$0xf]
  %v2304 = vld [vmem:[%s3 + $0x12c] sm:$0xf]
  %v2305 = vld [vmem:[%s3 + $0x130] sm:$0xf]
  %v2306 = vld [vmem:[%s3 + $0x134] sm:$0xf]
  %v2307 = vld [vmem:[%s3 + $0x138] sm:$0xf]
  %v2308 = vld [vmem:[%s3 + $0x13c] sm:$0xf]
  %v2309 = vld [vmem:[%s3 + $0x140] sm:$0xf]
  %v2310 = vld [vmem:[%s3 + $0x144] sm:$0xf]
  %v2311 = vld [vmem:[%s3 + $0x148] sm:$0xf]
  %v2312 = vld [vmem:[%s3 + $0x14c] sm:$0xf]
  %v2313 = vld [vmem:[%s3 + $0x150] sm:$0xf]
  %v2314 = vld [vmem:[%s3 + $0x154] sm:$0xf]
  %v2315 = vld [vmem:[%s3 + $0x158] sm:$0xf]
  %v2316 = vld [vmem:[%s3 + $0x15c] sm:$0xf]
  %v2317 = vld [vmem:[%s3 + $0x160] sm:$0xf]
  %v2318 = vld [vmem:[%s3 + $0x164] sm:$0xf]
  %v2319 = vld [vmem:[%s3 + $0x168] sm:$0xf]
  %v2320 = vld [vmem:[%s3 + $0x16c] sm:$0xf]
  %v2321 = vld [vmem:[%s3 + $0x170] sm:$0xf]
  %v2322 = vld [vmem:[%s3 + $0x174] sm:$0xf]
  %v2323 = vld [vmem:[%s3 + $0x178] sm:$0xf]
  %v2324 = vld [vmem:[%s3 + $0x17c] sm:$0xf]
  %v2325 = vld [vmem:[%s4] sm:$0x1]
  %v2327 = vlaneseq
  %v2328 = vshrl.u32 %v2327, 7
  %v2329 = vsub.s32 0, %v2328
  %v2330 = vrot.slane %v2325, %v2329
  %v2428 = vunpack.c.l.b16 %v2229
  %v2429 = vunpack.c.l.b16 %v2230
  %v2430 = vunpack.c.l.b16 %v2231
  %v2431 = vunpack.c.l.b16 %v2232
  %v2432 = vunpack.c.l.b16 %v2233
  %v2433 = vunpack.c.l.b16 %v2234
  %v2434 = vunpack.c.l.b16 %v2235
  %v2435 = vunpack.c.l.b16 %v2236
  %v2436 = vunpack.c.l.b16 %v2237
  %v2437 = vunpack.c.l.b16 %v2238
  %v2438 = vunpack.c.l.b16 %v2239
  %v2439 = vunpack.c.l.b16 %v2240
  %v2440 = vunpack.c.l.b16 %v2241
  %v2441 = vunpack.c.l.b16 %v2242
  %v2442 = vunpack.c.l.b16 %v2243
  %v2443 = vunpack.c.l.b16 %v2244
  %v2444 = vunpack.c.l.b16 %v2245
  %v2445 = vunpack.c.l.b16 %v2246
  %v2446 = vunpack.c.l.b16 %v2247
  %v2447 = vunpack.c.l.b16 %v2248
  %v2448 = vunpack.c.l.b16 %v2249
  %v2449 = vunpack.c.l.b16 %v2250
  %v2450 = vunpack.c.l.b16 %v2251
  %v2451 = vunpack.c.l.b16 %v2252
  %v2452 = vunpack.c.l.b16 %v2253
  %v2453 = vunpack.c.l.b16 %v2254
  %v2454 = vunpack.c.l.b16 %v2255
  %v2455 = vunpack.c.l.b16 %v2256
  %v2456 = vunpack.c.l.b16 %v2257
  %v2457 = vunpack.c.l.b16 %v2258
  %v2458 = vunpack.c.l.b16 %v2259
  %v2459 = vunpack.c.l.b16 %v2260
  %v2460 = vunpack.c.l.b16 %v2261
  %v2461 = vunpack.c.l.b16 %v2262
  %v2462 = vunpack.c.l.b16 %v2263
  %v2463 = vunpack.c.l.b16 %v2264
  %v2464 = vunpack.c.l.b16 %v2265
  %v2465 = vunpack.c.l.b16 %v2266
  %v2466 = vunpack.c.l.b16 %v2267
  %v2467 = vunpack.c.l.b16 %v2268
  %v2468 = vunpack.c.l.b16 %v2269
  %v2469 = vunpack.c.l.b16 %v2270
  %v2470 = vunpack.c.l.b16 %v2271
  %v2471 = vunpack.c.l.b16 %v2272
  %v2472 = vunpack.c.l.b16 %v2273
  %v2473 = vunpack.c.l.b16 %v2274
  %v2474 = vunpack.c.l.b16 %v2275
  %v2475 = vunpack.c.l.b16 %v2276
  %v2476 = vunpack.c.l.b16 %v2277
  %v2477 = vunpack.c.l.b16 %v2278
  %v2478 = vunpack.c.l.b16 %v2279
  %v2479 = vunpack.c.l.b16 %v2280
  %v2480 = vunpack.c.l.b16 %v2281
  %v2481 = vunpack.c.l.b16 %v2282
  %v2482 = vunpack.c.l.b16 %v2283
  %v2483 = vunpack.c.l.b16 %v2284
  %v2484 = vunpack.c.l.b16 %v2285
  %v2485 = vunpack.c.l.b16 %v2286
  %v2486 = vunpack.c.l.b16 %v2287
  %v2487 = vunpack.c.l.b16 %v2288
  %v2488 = vunpack.c.l.b16 %v2289
  %v2489 = vunpack.c.l.b16 %v2290
  %v2490 = vunpack.c.l.b16 %v2291
  %v2491 = vunpack.c.l.b16 %v2292
  %v2492 = vunpack.c.l.b16 %v2293
  %v2493 = vunpack.c.l.b16 %v2294
  %v2494 = vunpack.c.l.b16 %v2295
  %v2495 = vunpack.c.l.b16 %v2296
  %v2496 = vunpack.c.l.b16 %v2297
  %v2497 = vunpack.c.l.b16 %v2298
  %v2498 = vunpack.c.l.b16 %v2299
  %v2499 = vunpack.c.l.b16 %v2300
  %v2500 = vunpack.c.l.b16 %v2301
  %v2501 = vunpack.c.l.b16 %v2302
  %v2502 = vunpack.c.l.b16 %v2303
  %v2503 = vunpack.c.l.b16 %v2304
  %v2504 = vunpack.c.l.b16 %v2305
  %v2505 = vunpack.c.l.b16 %v2306
  %v2506 = vunpack.c.l.b16 %v2307
  %v2507 = vunpack.c.l.b16 %v2308
  %v2508 = vunpack.c.l.b16 %v2309
  %v2509 = vunpack.c.l.b16 %v2310
  %v2510 = vunpack.c.l.b16 %v2311
  %v2511 = vunpack.c.l.b16 %v2312
  %v2512 = vunpack.c.l.b16 %v2313
  %v2513 = vunpack.c.l.b16 %v2314
  %v2514 = vunpack.c.l.b16 %v2315
  %v2515 = vunpack.c.l.b16 %v2316
  %v2516 = vunpack.c.l.b16 %v2317
  %v2517 = vunpack.c.l.b16 %v2318
  %v2518 = vunpack.c.l.b16 %v2319
  %v2519 = vunpack.c.l.b16 %v2320
  %v2520 = vunpack.c.l.b16 %v2321
  %v2521 = vunpack.c.l.b16 %v2322
  %v2522 = vunpack.c.l.b16 %v2323
  %v2523 = vunpack.c.l.b16 %v2324
  %v2524 = vpack.c.b16 %v2429, %v2428
  %v2525 = vpack.c.b16 %v2431, %v2430
  %v2526 = vpack.c.b16 %v2433, %v2432
  %v2527 = vpack.c.b16 %v2435, %v2434
  %v2528 = vpack.c.b16 %v2437, %v2436
  %v2529 = vpack.c.b16 %v2439, %v2438
  %v2530 = vpack.c.b16 %v2441, %v2440
  %v2531 = vpack.c.b16 %v2443, %v2442
  %v2532 = vpack.c.b16 %v2445, %v2444
  %v2533 = vpack.c.b16 %v2447, %v2446
  %v2534 = vpack.c.b16 %v2449, %v2448
  %v2535 = vpack.c.b16 %v2451, %v2450
  %v2536 = vpack.c.b16 %v2453, %v2452
  %v2537 = vpack.c.b16 %v2455, %v2454
  %v2538 = vpack.c.b16 %v2457, %v2456
  %v2539 = vpack.c.b16 %v2459, %v2458
  %v2540 = vpack.c.b16 %v2461, %v2460
  %v2541 = vpack.c.b16 %v2463, %v2462
  %v2542 = vpack.c.b16 %v2465, %v2464
  %v2543 = vpack.c.b16 %v2467, %v2466
  %v2544 = vpack.c.b16 %v2469, %v2468
  %v2545 = vpack.c.b16 %v2471, %v2470
  %v2546 = vpack.c.b16 %v2473, %v2472
  %v2547 = vpack.c.b16 %v2475, %v2474
  %v2548 = vpack.c.b16 %v2477, %v2476
  %v2549 = vpack.c.b16 %v2479, %v2478
  %v2550 = vpack.c.b16 %v2481, %v2480
  %v2551 = vpack.c.b16 %v2483, %v2482
  %v2552 = vpack.c.b16 %v2485, %v2484
  %v2553 = vpack.c.b16 %v2487, %v2486
  %v2554 = vpack.c.b16 %v2489, %v2488
  %v2555 = vpack.c.b16 %v2491, %v2490
  %v2556 = vpack.c.b16 %v2493, %v2492
  %v2557 = vpack.c.b16 %v2495, %v2494
  %v2558 = vpack.c.b16 %v2497, %v2496
  %v2559 = vpack.c.b16 %v2499, %v2498
  %v2560 = vpack.c.b16 %v2501, %v2500
  %v2561 = vpack.c.b16 %v2503, %v2502
  %v2562 = vpack.c.b16 %v2505, %v2504
  %v2563 = vpack.c.b16 %v2507, %v2506
  %v2564 = vpack.c.b16 %v2509, %v2508
  %v2565 = vpack.c.b16 %v2511, %v2510
  %v2566 = vpack.c.b16 %v2513, %v2512
  %v2567 = vpack.c.b16 %v2515, %v2514
  %v2568 = vpack.c.b16 %v2517, %v2516
  %v2569 = vpack.c.b16 %v2519, %v2518
  %v2570 = vpack.c.b16 %v2521, %v2520
  %v2571 = vpack.c.b16 %v2523, %v2522
  %2620 = vmatprep.subr.bf16.mxu0 0
  %2621 = vmatpush1.bf16.msra.mxu0 %v2524
  %2622 = vmatprep.subr.bf16.mxu0 0
  %2623 = vmatpush1.bf16.msra.mxu0 %v2525
  %2624 = vmatprep.subr.bf16.mxu0 0
  %2625 = vmatpush1.bf16.msra.mxu0 %v2526
  %2626 = vmatprep.subr.bf16.mxu0 0
  %2627 = vmatpush1.bf16.msra.mxu0 %v2527
  %2628 = vmatprep.subr.bf16.mxu0 0
  %2629 = vmatpush1.bf16.msra.mxu0 %v2528
  %2630 = vmatprep.subr.bf16.mxu0 0
  %2631 = vmatpush1.bf16.msra.mxu0 %v2529
  %2632 = vmatprep.subr.bf16.mxu0 0
  %2633 = vmatpush1.bf16.msra.mxu0 %v2530
  %2634 = vmatprep.subr.bf16.mxu0 0
  %2635 = vmatpush1.bf16.msra.mxu0 %v2531
  %2636 = vmatprep.subr.bf16.mxu0 0
  %2637 = vmatpush1.bf16.msra.mxu0 %v2532
  %2638 = vmatprep.subr.bf16.mxu0 0
  %2639 = vmatpush1.bf16.msra.mxu0 %v2533
  %2640 = vmatprep.subr.bf16.mxu0 0
  %2641 = vmatpush1.bf16.msra.mxu0 %v2534
  %2642 = vmatprep.subr.bf16.mxu0 0
  %2643 = vmatpush1.bf16.msra.mxu0 %v2535
  %2644 = vmatprep.subr.bf16.mxu0 0
  %2645 = vmatpush1.bf16.msra.mxu0 %v2536
  %2646 = vmatprep.subr.bf16.mxu0 0
  %2647 = vmatpush1.bf16.msra.mxu0 %v2537
  %2648 = vmatprep.subr.bf16.mxu0 0
  %2649 = vmatpush1.bf16.msra.mxu0 %v2538
  %2650 = vmatprep.subr.bf16.mxu0 0
  %2651 = vmatpush1.bf16.msra.mxu0 %v2539
  %2652 = vmatprep.mubr.bf16.mxu0 %v2224
  %2653 = vmatmul.mubr.bf16.gmra.mrb[0].mxu0 %v2223
  %v2654 = vpop.f32.mrb[0].mxu0
  %v2655 = vadd.f32 %v2330, %v2654
  %v2656 = vpop.f32.mrb[0].mxu0
  %v2657 = vpop.f32.mrb[0].mxu0
  %v2658 = vpop.f32.mrb[0].mxu0
  %2659 = vdwg.mxu0
  %2660 = vmatprep.subr.bf16.mxu0 0
  %2661 = vmatpush1.bf16.msra.mxu0 %v2540
  %2662 = vmatprep.subr.bf16.mxu0 0
  %2663 = vmatpush1.bf16.msra.mxu0 %v2541
  %2664 = vmatprep.subr.bf16.mxu0 0
  %2665 = vmatpush1.bf16.msra.mxu0 %v2542
  %2666 = vmatprep.subr.bf16.mxu0 0
  %2667 = vmatpush1.bf16.msra.mxu0 %v2543
  %2668 = vmatprep.subr.bf16.mxu0 0
  %2669 = vmatpush1.bf16.msra.mxu0 %v2544
  %2670 = vmatprep.subr.bf16.mxu0 0
  %2671 = vmatpush1.bf16.msra.mxu0 %v2545
  %2672 = vmatprep.subr.bf16.mxu0 0
  %2673 = vmatpush1.bf16.msra.mxu0 %v2546
  %2674 = vmatprep.subr.bf16.mxu0 0
  %2675 = vmatpush1.bf16.msra.mxu0 %v2547
  %2676 = vmatprep.subr.bf16.mxu0 0
  %2677 = vmatpush1.bf16.msra.mxu0 %v2548
  %2678 = vmatprep.subr.bf16.mxu0 0
  %2679 = vmatpush1.bf16.msra.mxu0 %v2549
  %2680 = vmatprep.subr.bf16.mxu0 0
  %2681 = vmatpush1.bf16.msra.mxu0 %v2550
  %2682 = vmatprep.subr.bf16.mxu0 0
  %2683 = vmatpush1.bf16.msra.mxu0 %v2551
  %2684 = vmatprep.subr.bf16.mxu0 0
  %2685 = vmatpush1.bf16.msra.mxu0 %v2552
  %2686 = vmatprep.subr.bf16.mxu0 0
  %2687 = vmatpush1.bf16.msra.mxu0 %v2553
  %2688 = vmatprep.subr.bf16.mxu0 0
  %2689 = vmatpush1.bf16.msra.mxu0 %v2554
  %2690 = vmatprep.subr.bf16.mxu0 0
  %2691 = vmatpush1.bf16.msra.mxu0 %v2555
  %2692 = vmatprep.mubr.bf16.mxu0 %v2226
  %2693 = vmatmul.mubr.bf16.gmra.mrb[0].mxu0 %v2225
  %v2694 = vpop.f32.mrb[0].mxu0
  %v2695 = vadd.f32 %v2655, %v2694
  %v2696 = vpop.f32.mrb[0].mxu0
  %v2697 = vpop.f32.mrb[0].mxu0
  %v2698 = vpop.f32.mrb[0].mxu0
  %2699 = vdwg.mxu0
  %2700 = vmatprep.subr.bf16.mxu0 0
  %2701 = vmatpush1.bf16.msra.mxu0 %v2556
  %2702 = vmatprep.subr.bf16.mxu0 0
  %2703 = vmatpush1.bf16.msra.mxu0 %v2557
  %2704 = vmatprep.subr.bf16.mxu0 0
  %2705 = vmatpush1.bf16.msra.mxu0 %v2558
  %2706 = vmatprep.subr.bf16.mxu0 0
  %2707 = vmatpush1.bf16.msra.mxu0 %v2559
  %2708 = vmatprep.subr.bf16.mxu0 0
  %2709 = vmatpush1.bf16.msra.mxu0 %v2560
  %2710 = vmatprep.subr.bf16.mxu0 0
  %2711 = vmatpush1.bf16.msra.mxu0 %v2561
  %2712 = vmatprep.subr.bf16.mxu0 0
  %2713 = vmatpush1.bf16.msra.mxu0 %v2562
  %2714 = vmatprep.subr.bf16.mxu0 0
  %2715 = vmatpush1.bf16.msra.mxu0 %v2563
  %2716 = vmatprep.subr.bf16.mxu0 0
  %2717 = vmatpush1.bf16.msra.mxu0 %v2564
  %2718 = vmatprep.subr.bf16.mxu0 0
  %2719 = vmatpush1.bf16.msra.mxu0 %v2565
  %2720 = vmatprep.subr.bf16.mxu0 0
  %2721 = vmatpush1.bf16.msra.mxu0 %v2566
  %2722 = vmatprep.subr.bf16.mxu0 0
  %2723 = vmatpush1.bf16.msra.mxu0 %v2567
  %2724 = vmatprep.subr.bf16.mxu0 0
  %2725 = vmatpush1.bf16.msra.mxu0 %v2568
  %2726 = vmatprep.subr.bf16.mxu0 0
  %2727 = vmatpush1.bf16.msra.mxu0 %v2569
  %2728 = vmatprep.subr.bf16.mxu0 0
  %2729 = vmatpush1.bf16.msra.mxu0 %v2570
  %2730 = vmatprep.subr.bf16.mxu0 0
  %2731 = vmatpush1.bf16.msra.mxu0 %v2571
  %2732 = vmatprep.mubr.bf16.mxu0 %v2228
  %2733 = vmatmul.mubr.bf16.gmra.mrb[0].mxu0 %v2227
  %v2734 = vpop.f32.mrb[0].mxu0
  %v2735 = vadd.f32 %v2695, %v2734
  %v2736 = vpop.f32.mrb[0].mxu0
  %v2737 = vpop.f32.mrb[0].mxu0
  %v2738 = vpop.f32.mrb[0].mxu0
  %2739 = vdwg.mxu0
  %v2740 = vmax.f32 %v2735, 0.0
  %v2741 = vld [vmem:[%s5] sm:$0x1]
  %v2743 = vlaneseq
  %v2744 = vshrl.u32 %v2743, 7
  %v2745 = vsub.s32 0, %v2744
  %v2746 = vrot.slane %v2741, %v2745
  %v2748 = vmul.f32 %v2740, %v2746
  %vm2749 = vcmask 1041408
  %v2750 = vsel %vm2749, %v2748, 0.0
  %2751 = vadd.xlane.f32.xlu0 %v2750
  %v2752 = vpop.xlane.xlu0 %2751
  %s2753 = sld [smem:[#allocation2]]
  %v2754 = vstv %s2753
  %v2755 = vadd.f32 %v2752, %v2754
  %v2756 = vsub.f32 0.0, %v2755
  %v2757 = vmul.f32 %v2756, 1.442695
  %v2758 = vpow.pop %v2757
  %v2759 = vadd.f32 %v2758, 1.0
  %v2760 = vrcp.pop %v2759
  %v2761 = vmul.f32 1.0, %v2760
  %vm2762 = vcmask 1024
  %2763 = vst.msk [vmem:[%s8] sm:$0x3] %vm2762, %v2761
  %v2764 = vld [vmem:[%s7] sm:$0x3]
  %v2765 = vmax.f32 %v2755, 0.0
  %v2766 = vmul.f32 %v2764, %v2755
  %v2767 = vsub.f32 %v2765, %v2766
  %v2768 = vand.u32 2147483647, %v2755
  %v2769 = vsub.f32 0.0, %v2768
  %v2770 = vmul.f32 %v2769, 1.442695
  %v2771 = vpow.pop %v2770
  %v2772 = vadd.f32 %v2771, 1.0
  %v2773 = vlog2.pop %v2772
  %v2774 = vmul.f32 %v2773, 0.6931472
  %v2775 = vadd.f32 %v2767, %v2774
  %2776 = vst.msk [vmem:[%s9] sm:$0x3] %vm2762, %v2775
  // Predicated region
  $region34: #{siamese_forward.1} parent=0 // pred_check
    _
  $region35: #{siamese_forward.1} parent=0 // pred_check_branch
    %2778 = sbr.rel (0) target = $region37
  $region36: #{siamese_forward.1} parent=0 // pred_region
    _
  $region37: #{siamese_forward.1} parent=0 // pred_fallthru
    _
  // Predicated region
  $region38: #{siamese_forward.1} parent=0 // pred_check
    _
  $region39: #{siamese_forward.1} parent=0 // pred_check_branch
    %2780 = sbr.rel (0) target = $region41
  $region40: #{siamese_forward.1} parent=0 // pred_region
    _
  $region41: #{siamese_forward.1} parent=0 // pred_fallthru
    _
  // Predicated region
  $region42: #{siamese_forward.1} parent=0 // pred_check
    _
  $region43: #{siamese_forward.1} parent=0 // pred_check_branch
    %2782 = sbr.rel (0) target = $region45
  $region44: #{siamese_forward.1} parent=0 // pred_region
    _
  $region45: #{siamese_forward.1} parent=0 // pred_fallthru
    _
  // Predicated region
  $region46: #{siamese_forward.1} parent=0 // pred_check
    _
  $region47: #{siamese_forward.1} parent=0 // pred_check_branch
    %2784 = sbr.rel (0) target = $region49
  $region48: #{siamese_forward.1} parent=0 // pred_region
    _
  $region49: #{siamese_forward.1} parent=0 // pred_fallthru
    _

</llo_original>
